<compile_context>
chip_gen: v7x
topology: tpu7x:2x2x1
jax: 0.10.0
libtpu: 0.0.40
codegen_flags: <defaults>
</compile_context>

<pallas_src>
import jax
import jax.numpy as jnp
from jax import lax
from jax.experimental import pallas as pl
from jax.experimental.pallas import tpu as pltpu

TGT_MAX_PAD = 32


# ------------------------------ kernel math ----------------------------------

def _lstm_cell(x, h, c, w_x, w_h, b):
    """Fused LSTM cell (PyTorch gate order i, f, g, o).

    w_x = w_ih^T (E, 4H) bf16, w_h = w_hh^T (H, 4H) bf16, b = b_ih + b_hh
    (1, 4H) f32.  Both dots run on the MXU with f32 accumulation; the gate
    nonlinearities and the cell update stay in f32.
    """
    gates = (jnp.dot(x, w_x, preferred_element_type=jnp.float32)
             + jnp.dot(h.astype(jnp.bfloat16), w_h,
                       preferred_element_type=jnp.float32)
             + b)                                                # (B, 4H) f32
    H = h.shape[-1]
    i_g = jax.nn.sigmoid(gates[:, 0 * H:1 * H])
    f_g = jax.nn.sigmoid(gates[:, 1 * H:2 * H])
    g_g = jnp.tanh(gates[:, 2 * H:3 * H])
    o_g = jax.nn.sigmoid(gates[:, 3 * H:4 * H])
    c_new = f_g * c + i_g * g_g
    h_new = o_g * jnp.tanh(c_new)
    return h_new, c_new


# --------------------------- fused encoder kernel -----------------------------

def enc_lstm_kernel(emb_ref, w_ref, b_ref, h_ref, c_ref):
    """grid = (direction,); the full S-step recurrence runs inside the kernel.

    Direction 0 reads time t, direction 1 reads time S-1-t; h/c are carried in
    registers via the fori_loop carry and written out once at the end.
    """
    d = pl.program_id(0)
    S, B, _ = emb_ref.shape
    E = emb_ref.shape[-1]
    H = h_ref.shape[-1]

    # Hoist resident weight/bias loads out of the recurrence.
    w_x = w_ref[:E, :]
    w_h = w_ref[E:, :]
    b = b_ref[...]

    def step(t, carry):
        h, c = carry
        idx = t + d * (S - 1 - 2 * t)          # t (fwd) or S-1-t (bwd)
        return _lstm_cell(emb_ref[idx], h, c, w_x, w_h, b)

    z = jnp.zeros((B, H), jnp.float32)
    h, c = lax.fori_loop(0, S, step, (z, z), unroll=True)
    h_ref[...] = h
    c_ref[...] = c


def encoder_forward(params, x_src):
    """Bidirectional single-layer LSTM encoder; returns (h, c), each (B, 2H)."""
    emb = jnp.take(params["src_embed"], x_src.T, axis=0).astype(jnp.bfloat16)  # (S,B,E)
    S, B, E = emb.shape
    H = params["enc_w"].shape[-1] // 4

    h_all, c_all = pl.pallas_call(
        enc_lstm_kernel,
        out_shape=(jax.ShapeDtypeStruct((2, B, H), jnp.float32),
                   jax.ShapeDtypeStruct((2, B, H), jnp.float32)),
        grid_spec=pltpu.PrefetchScalarGridSpec(
            num_scalar_prefetch=0,
            grid=(2,),
            in_specs=[
                # full time-major embedding slab, resident for both directions
                pl.BlockSpec((S, B, E), lambda d: (0, 0, 0)),
                # per-direction stacked weights / bias, DMA'd once per direction
                pl.BlockSpec((None, E + H, 4 * H), lambda d: (d, 0, 0)),
                pl.BlockSpec((None, 1, 4 * H), lambda d: (d, 0, 0)),
            ],
            out_specs=(
                pl.BlockSpec((None, B, H), lambda d: (d, 0, 0)),
                pl.BlockSpec((None, B, H), lambda d: (d, 0, 0)),
            ),
        ),
        compiler_params=pltpu.CompilerParams(
            dimension_semantics=("parallel",)),
    )(emb, params["enc_w"], params["enc_b"])

    # h.permute(1,0,2).contiguous().view(B,-1) == concat([fwd, bwd], axis=-1)
    h = jnp.concatenate([h_all[0], h_all[1]], axis=-1)           # (B, 2H)
    c = jnp.concatenate([c_all[0], c_all[1]], axis=-1)           # (B, 2H)
    return h, c


# --------------------------- fused decoder kernel -----------------------------

def dec_lstm_fc_kernel(n_ref, emb_ref, h0_ref, c0_ref, w_ref, b_ref,
                       wfc_ref, bfc_ref, logits_ref):
    """Single invocation: teacher-forced decode (LSTM cell + fc) for all steps.

    n_ref (SMEM, scalar prefetch) holds the number of active decode steps;
    rows past the early stop stay zero (matches torch.zeros-init dec_out).
    """
    E = emb_ref.shape[-1]

    # Hoist resident weight/bias loads out of the recurrence.
    w_x = w_ref[:E, :]
    w_h = w_ref[E:, :]
    b = b_ref[...]
    w_fc = wfc_ref[...]
    b_fc = bfc_ref[...]

    logits_ref[...] = jnp.zeros_like(logits_ref)

    def step(t, carry):
        h, c = carry
        h_new, c_new = _lstm_cell(emb_ref[t], h, c, w_x, w_h, b)
        logits_ref[t] = (jnp.dot(h_new.astype(jnp.bfloat16), w_fc,
                                 preferred_element_type=jnp.float32) + b_fc)
        return (h_new, c_new)

    lax.fori_loop(0, n_ref[0], step, (h0_ref[...], c0_ref[...]))


def decoder_forward_train(params, enc_c, enc_h, x_tgt):
    """Teacher-forced training-mode decode, fused into one pallas_call."""
    B, HD = enc_h.shape
    T = TGT_MAX_PAD
    E = params["tgt_embed"].shape[-1]
    V = params["fc_w"].shape[-1]

    # Input token to decode step i is x_tgt[:, i]; gather all T-1 embedding rows
    # once, time-major (T-1, B, E).
    emb = jnp.take(params["tgt_embed"], x_tgt[:, :T - 1].T, axis=0).astype(jnp.bfloat16)

    # PyTorch early stop: after step i (< T-2) the loop breaks iff all of the
    # next teacher tokens x_tgt[:, i+1] are EOS(2)/PAD(3).  With teacher forcing
    # this depends only on x_tgt, so compute the active step count once here
    # (no per-step host sync).
    nxt = x_tgt[:, 1:T - 1]
    stop = jnp.all((nxt == 2) | (nxt == 3), axis=0)              # (T-2,)
    n_steps = jnp.where(jnp.any(stop), jnp.argmax(stop) + 1, T - 1)
    n_steps = n_steps.astype(jnp.int32).reshape((1,))

    logits_tm = pl.pallas_call(
        dec_lstm_fc_kernel,
        out_shape=jax.ShapeDtypeStruct((T - 1, B, V), jnp.float32),
        grid_spec=pltpu.PrefetchScalarGridSpec(
            num_scalar_prefetch=1,                               # n_steps -> SMEM
            grid=(1,),
            in_specs=[
                pl.BlockSpec((T - 1, B, E), lambda i, n: (0, 0, 0)),  # emb (tm)
                pl.BlockSpec((B, HD), lambda i, n: (0, 0)),           # h0 = enc_h
                pl.BlockSpec((B, HD), lambda i, n: (0, 0)),           # c0 = enc_c
                pl.BlockSpec((E + HD, 4 * HD), lambda i, n: (0, 0)),  # dec_w
                pl.BlockSpec((1, 4 * HD), lambda i, n: (0, 0)),       # dec_b
                pl.BlockSpec((HD, V), lambda i, n: (0, 0)),           # fc_w
                pl.BlockSpec((1, V), lambda i, n: (0, 0)),            # fc_b
            ],
            out_specs=pl.BlockSpec((T - 1, B, V), lambda i, n: (0, 0, 0)),
        ),
        compiler_params=pltpu.CompilerParams(
            dimension_semantics=("arbitrary",)),
    )(n_steps, emb, enc_h, enc_c, params["dec_w"], params["dec_b"],
      params["fc_w"], params["fc_b"])

    return jnp.transpose(logits_tm, (1, 0, 2))                   # (B, T-1, V)


# -------------------------------- full model ----------------------------------

@jax.jit
def seq2seq_forward(params, x_src, x_tgt):
    """Training-mode forward with deterministic teacher forcing."""
    h, c = encoder_forward(params, x_src)
    # Seq2Seq.forward passes (c, h) -> decoder(enc_c=c, enc_h=h):
    # the decoder LSTM state starts from (h_prev=h, c_prev=c).
    return decoder_forward_train(params, c, h, x_tgt)


# ------------------------------ parameter init --------------------------------

def _xavier_normal(key, out_f, in_f):
    std = (2.0 / (in_f + out_f)) ** 0.5
    return std * jax.random.normal(key, (out_f, in_f), dtype=jnp.float32)


def _stacked_lstm_weight(k_ih, k_hh, in_f, hid):
    """[w_ih^T ; w_hh^T] stacked along K -> (in_f + hid, 4*hid); xavier_normal."""
    w_ih = _xavier_normal(k_ih, 4 * hid, in_f)
    w_hh = _xavier_normal(k_hh, 4 * hid, hid)
    return jnp.concatenate([w_ih.T, w_hh.T], axis=0)


def init_params(key, vocab_src, vocab_tgt, e_src, e_tgt, hidden_size):
    H = hidden_size
    HD = 2 * hidden_size                       # decoder hidden size
    ks = jax.random.split(key, 10)
    enc_w = jnp.stack([_stacked_lstm_weight(ks[2], ks[3], e_src, H),
                       _stacked_lstm_weight(ks[4], ks[5], e_src, H)], axis=0)
    fc_bound = 1.0 / (HD ** 0.5)
    return {
        # embeddings (nn.Embedding default ~ N(0, 1))
        "src_embed": jax.random.normal(ks[0], (vocab_src, e_src), jnp.float32),
        "tgt_embed": jax.random.normal(ks[1], (vocab_tgt, e_tgt), jnp.float32),
        # encoder bidirectional LSTM: weights xavier_normal, biases zero
        # (combined bias b_ih + b_hh = 0); stored stacked per direction, bf16.
        "enc_w": enc_w.astype(jnp.bfloat16),                     # (2, E+H, 4H)
        "enc_b": jnp.zeros((2, 1, 4 * H), jnp.float32),
        # decoder LSTM (input = output_size = e_tgt, hidden = 2H)
        "dec_w": _stacked_lstm_weight(ks[6], ks[7], e_tgt, HD).astype(jnp.bfloat16),
        "dec_b": jnp.zeros((1, 4 * HD), jnp.float32),
        # fc = Linear(2H, vocab_tgt): weight xavier_normal, bias nn.Linear default
        "fc_w": _xavier_normal(ks[8], vocab_tgt, HD).T.astype(jnp.bfloat16),
        "fc_b": jax.random.uniform(ks[9], (1, vocab_tgt), jnp.float32,
                                   -fc_bound, fc_bound),
    }


# ----------------------------------- main --------------------------------------

if __name__ == "__main__":
    B = 2              # batch
    S_SRC = 8          # source sequence length
    VOCAB_SRC = 64
    VOCAB_TGT = 128
    E_SRC = 16         # input_size  (src embedding dim)
    E_TGT = 16         # output_size (tgt embedding dim)
    HIDDEN = 32        # hidden_size (decoder hidden = 2*HIDDEN = 64)

    root = jax.random.PRNGKey(0)
    k_params, kx, kt = jax.random.split(root, 3)
    params = init_params(k_params, VOCAB_SRC, VOCAB_TGT, E_SRC, E_TGT, HIDDEN)

    x_src = jax.random.randint(kx, (B, S_SRC), 0, VOCAB_SRC, dtype=jnp.int32)
    # target tokens avoid ids 2/3 so the teacher-forced decode runs all 31 steps
    x_tgt = jax.random.randint(kt, (B, TGT_MAX_PAD), 4, VOCAB_TGT, dtype=jnp.int32)

    out = seq2seq_forward(params, x_src, x_tgt)
    out = jax.block_until_ready(out)

    assert out.shape == (B, TGT_MAX_PAD - 1, VOCAB_TGT), out.shape
    assert out.dtype == jnp.float32
    assert bool(jnp.all(jnp.isfinite(out)))
    print("KERNEL_OK")
</pallas_src>

<mosaic_0001>
module attributes {stable_mosaic.version = 11 : i64} {
  func.func @enc_lstm_kernel(%arg0: i32, %arg1: memref<8x2x16xbf16, #tpu.memory_space<vmem>>, %arg2: memref<1x48x128xbf16, #tpu.memory_space<vmem>>, %arg3: memref<1x1x128xf32, #tpu.memory_space<vmem>>, %arg4: memref<1x2x32xf32, #tpu.memory_space<vmem>>, %arg5: memref<1x2x32xf32, #tpu.memory_space<vmem>>) attributes {dimension_semantics = [#tpu.dimension_semantics<parallel>], iteration_bounds = array<i64: 2>, scalar_prefetch = 0 : i64, scratch_operands = 0 : i64, tpu.core_type = #tpu.core_type<tc>, window_params = [{pipeline_mode = #tpu.pipeline_mode<synchronous>, transform_indices = @transform_0, window_bounds = array<i64: 8, 2, 16>}, {transform_indices = @transform_1, window_bounds = array<i64: 1, 48, 128>}, {transform_indices = @transform_2, window_bounds = array<i64: 1, 1, 128>}, {transform_indices = @transform_3, window_bounds = array<i64: 1, 2, 32>}, {transform_indices = @transform_4, window_bounds = array<i64: 1, 2, 32>}]} {
    %c0 = arith.constant 0 : index
    %c0_0 = arith.constant 0 : index
    %c0_1 = arith.constant 0 : index
    %0 = vector.load %arg2[%c0, %c0_0, %c0_1] : memref<1x48x128xbf16, #tpu.memory_space<vmem>>, vector<1x16x128xbf16>
    %1 = vector.shape_cast %0 : vector<1x16x128xbf16> to vector<16x128xbf16>
    %c0_2 = arith.constant 0 : index
    %c16 = arith.constant 16 : index
    %c0_3 = arith.constant 0 : index
    %2 = vector.load %arg2[%c0_2, %c16, %c0_3] : memref<1x48x128xbf16, #tpu.memory_space<vmem>>, vector<1x32x128xbf16>
    %3 = vector.shape_cast %2 : vector<1x32x128xbf16> to vector<32x128xbf16>
    %c0_4 = arith.constant 0 : index
    %c0_5 = arith.constant 0 : index
    %c0_6 = arith.constant 0 : index
    %4 = vector.load %arg3[%c0_4, %c0_5, %c0_6] : memref<1x1x128xf32, #tpu.memory_space<vmem>>, vector<1x1x128xf32>
    %5 = vector.shape_cast %4 : vector<1x1x128xf32> to vector<1x128xf32>
    %cst = arith.constant 0.000000e+00 : f32
    %6 = vector.broadcast %cst : f32 to vector<2x32xf32>
    %c0_i32 = arith.constant 0 : i32
    %c2_i32 = arith.constant 2 : i32
    %7 = arith.muli %c2_i32, %c0_i32 : i32
    %c7_i32 = arith.constant 7 : i32
    %8 = arith.subi %c7_i32, %7 : i32
    %9 = arith.muli %arg0, %8 : i32
    %10 = arith.addi %c0_i32, %9 : i32
    %11 = arith.index_cast %10 : i32 to index
    %c0_7 = arith.constant 0 : index
    %c0_8 = arith.constant 0 : index
    %12 = vector.load %arg1[%11, %c0_7, %c0_8] : memref<8x2x16xbf16, #tpu.memory_space<vmem>>, vector<1x2x16xbf16>
    %13 = vector.shape_cast %12 : vector<1x2x16xbf16> to vector<2x16xbf16>
    %cst_9 = arith.constant dense<0.000000e+00> : vector<2x128xf32>
    %14 = tpu.matmul %13, %1, %cst_9 {dimension_numbers = #tpu.dot_dimension_numbers<[1], [0], [0], [1], [0, 0, 1, 1], [], []>} : vector<2x16xbf16>, vector<16x128xbf16>, vector<2x128xf32> -> vector<2x128xf32>
    %15 = arith.truncf %6 : vector<2x32xf32> to vector<2x32xbf16>
    %cst_10 = arith.constant dense<0.000000e+00> : vector<2x128xf32>
    %16 = tpu.matmul %15, %3, %cst_10 {dimension_numbers = #tpu.dot_dimension_numbers<[1], [0], [0], [1], [0, 0, 1, 1], [], []>} : vector<2x32xbf16>, vector<32x128xbf16>, vector<2x128xf32> -> vector<2x128xf32>
    %17 = arith.addf %14, %16 : vector<2x128xf32>
    %18 = vector.broadcast %5 : vector<1x128xf32> to vector<2x128xf32>
    %19 = arith.addf %17, %18 : vector<2x128xf32>
    %20 = vector.extract_strided_slice %19 {offsets = [0, 0], sizes = [2, 32], strides = [1, 1]} : vector<2x128xf32> to vector<2x32xf32>
    %21 = arith.negf %20 : vector<2x32xf32>
    %22 = math.exp %21 : vector<2x32xf32>
    %cst_11 = arith.constant 1.000000e+00 : f32
    %23 = vector.broadcast %cst_11 : f32 to vector<2x32xf32>
    %24 = arith.addf %23, %22 : vector<2x32xf32>
    %25 = arith.divf %23, %24 : vector<2x32xf32>
    %26 = vector.extract_strided_slice %19 {offsets = [0, 32], sizes = [2, 32], strides = [1, 1]} : vector<2x128xf32> to vector<2x32xf32>
    %27 = arith.negf %26 : vector<2x32xf32>
    %28 = math.exp %27 : vector<2x32xf32>
    %cst_12 = arith.constant 1.000000e+00 : f32
    %29 = vector.broadcast %cst_12 : f32 to vector<2x32xf32>
    %30 = arith.addf %29, %28 : vector<2x32xf32>
    %31 = arith.divf %29, %30 : vector<2x32xf32>
    %32 = vector.extract_strided_slice %19 {offsets = [0, 64], sizes = [2, 32], strides = [1, 1]} : vector<2x128xf32> to vector<2x32xf32>
    %33 = math.tanh %32 : vector<2x32xf32>
    %34 = vector.extract_strided_slice %19 {offsets = [0, 96], sizes = [2, 32], strides = [1, 1]} : vector<2x128xf32> to vector<2x32xf32>
    %35 = arith.negf %34 : vector<2x32xf32>
    %36 = math.exp %35 : vector<2x32xf32>
    %cst_13 = arith.constant 1.000000e+00 : f32
    %37 = vector.broadcast %cst_13 : f32 to vector<2x32xf32>
    %38 = arith.addf %37, %36 : vector<2x32xf32>
    %39 = arith.divf %37, %38 : vector<2x32xf32>
    %40 = arith.mulf %31, %6 : vector<2x32xf32>
    %41 = arith.mulf %25, %33 : vector<2x32xf32>
    %42 = arith.addf %40, %41 : vector<2x32xf32>
    %43 = math.tanh %42 : vector<2x32xf32>
    %44 = arith.mulf %39, %43 : vector<2x32xf32>
    %c1_i32 = arith.constant 1 : i32
    %c2_i32_14 = arith.constant 2 : i32
    %45 = arith.muli %c2_i32_14, %c1_i32 : i32
    %c7_i32_15 = arith.constant 7 : i32
    %46 = arith.subi %c7_i32_15, %45 : i32
    %47 = arith.muli %arg0, %46 : i32
    %48 = arith.addi %c1_i32, %47 : i32
    %49 = arith.index_cast %48 : i32 to index
    %c0_16 = arith.constant 0 : index
    %c0_17 = arith.constant 0 : index
    %50 = vector.load %arg1[%49, %c0_16, %c0_17] : memref<8x2x16xbf16, #tpu.memory_space<vmem>>, vector<1x2x16xbf16>
    %51 = vector.shape_cast %50 : vector<1x2x16xbf16> to vector<2x16xbf16>
    %cst_18 = arith.constant dense<0.000000e+00> : vector<2x128xf32>
    %52 = tpu.matmul %51, %1, %cst_18 {dimension_numbers = #tpu.dot_dimension_numbers<[1], [0], [0], [1], [0, 0, 1, 1], [], []>} : vector<2x16xbf16>, vector<16x128xbf16>, vector<2x128xf32> -> vector<2x128xf32>
    %53 = arith.truncf %44 : vector<2x32xf32> to vector<2x32xbf16>
    %cst_19 = arith.constant dense<0.000000e+00> : vector<2x128xf32>
    %54 = tpu.matmul %53, %3, %cst_19 {dimension_numbers = #tpu.dot_dimension_numbers<[1], [0], [0], [1], [0, 0, 1, 1], [], []>} : vector<2x32xbf16>, vector<32x128xbf16>, vector<2x128xf32> -> vector<2x128xf32>
    %55 = arith.addf %52, %54 : vector<2x128xf32>
    %56 = vector.broadcast %5 : vector<1x128xf32> to vector<2x128xf32>
    %57 = arith.addf %55, %56 : vector<2x128xf32>
    %58 = vector.extract_strided_slice %57 {offsets = [0, 0], sizes = [2, 32], strides = [1, 1]} : vector<2x128xf32> to vector<2x32xf32>
    %59 = arith.negf %58 : vector<2x32xf32>
    %60 = math.exp %59 : vector<2x32xf32>
    %cst_20 = arith.constant 1.000000e+00 : f32
    %61 = vector.broadcast %cst_20 : f32 to vector<2x32xf32>
    %62 = arith.addf %61, %60 : vector<2x32xf32>
    %63 = arith.divf %61, %62 : vector<2x32xf32>
    %64 = vector.extract_strided_slice %57 {offsets = [0, 32], sizes = [2, 32], strides = [1, 1]} : vector<2x128xf32> to vector<2x32xf32>
    %65 = arith.negf %64 : vector<2x32xf32>
    %66 = math.exp %65 : vector<2x32xf32>
    %cst_21 = arith.constant 1.000000e+00 : f32
    %67 = vector.broadcast %cst_21 : f32 to vector<2x32xf32>
    %68 = arith.addf %67, %66 : vector<2x32xf32>
    %69 = arith.divf %67, %68 : vector<2x32xf32>
    %70 = vector.extract_strided_slice %57 {offsets = [0, 64], sizes = [2, 32], strides = [1, 1]} : vector<2x128xf32> to vector<2x32xf32>
    %71 = math.tanh %70 : vector<2x32xf32>
    %72 = vector.extract_strided_slice %57 {offsets = [0, 96], sizes = [2, 32], strides = [1, 1]} : vector<2x128xf32> to vector<2x32xf32>
    %73 = arith.negf %72 : vector<2x32xf32>
    %74 = math.exp %73 : vector<2x32xf32>
    %cst_22 = arith.constant 1.000000e+00 : f32
    %75 = vector.broadcast %cst_22 : f32 to vector<2x32xf32>
    %76 = arith.addf %75, %74 : vector<2x32xf32>
    %77 = arith.divf %75, %76 : vector<2x32xf32>
    %78 = arith.mulf %69, %42 : vector<2x32xf32>
    %79 = arith.mulf %63, %71 : vector<2x32xf32>
    %80 = arith.addf %78, %79 : vector<2x32xf32>
    %81 = math.tanh %80 : vector<2x32xf32>
    %82 = arith.mulf %77, %81 : vector<2x32xf32>
    %c2_i32_23 = arith.constant 2 : i32
    %c2_i32_24 = arith.constant 2 : i32
    %83 = arith.muli %c2_i32_24, %c2_i32_23 : i32
    %c7_i32_25 = arith.constant 7 : i32
    %84 = arith.subi %c7_i32_25, %83 : i32
    %85 = arith.muli %arg0, %84 : i32
    %86 = arith.addi %c2_i32_23, %85 : i32
    %87 = arith.index_cast %86 : i32 to index
    %c0_26 = arith.constant 0 : index
    %c0_27 = arith.constant 0 : index
    %88 = vector.load %arg1[%87, %c0_26, %c0_27] : memref<8x2x16xbf16, #tpu.memory_space<vmem>>, vector<1x2x16xbf16>
    %89 = vector.shape_cast %88 : vector<1x2x16xbf16> to vector<2x16xbf16>
    %cst_28 = arith.constant dense<0.000000e+00> : vector<2x128xf32>
    %90 = tpu.matmul %89, %1, %cst_28 {dimension_numbers = #tpu.dot_dimension_numbers<[1], [0], [0], [1], [0, 0, 1, 1], [], []>} : vector<2x16xbf16>, vector<16x128xbf16>, vector<2x128xf32> -> vector<2x128xf32>
    %91 = arith.truncf %82 : vector<2x32xf32> to vector<2x32xbf16>
    %cst_29 = arith.constant dense<0.000000e+00> : vector<2x128xf32>
    %92 = tpu.matmul %91, %3, %cst_29 {dimension_numbers = #tpu.dot_dimension_numbers<[1], [0], [0], [1], [0, 0, 1, 1], [], []>} : vector<2x32xbf16>, vector<32x128xbf16>, vector<2x128xf32> -> vector<2x128xf32>
    %93 = arith.addf %90, %92 : vector<2x128xf32>
    %94 = vector.broadcast %5 : vector<1x128xf32> to vector<2x128xf32>
    %95 = arith.addf %93, %94 : vector<2x128xf32>
    %96 = vector.extract_strided_slice %95 {offsets = [0, 0], sizes = [2, 32], strides = [1, 1]} : vector<2x128xf32> to vector<2x32xf32>
    %97 = arith.negf %96 : vector<2x32xf32>
    %98 = math.exp %97 : vector<2x32xf32>
    %cst_30 = arith.constant 1.000000e+00 : f32
    %99 = vector.broadcast %cst_30 : f32 to vector<2x32xf32>
    %100 = arith.addf %99, %98 : vector<2x32xf32>
    %101 = arith.divf %99, %100 : vector<2x32xf32>
    %102 = vector.extract_strided_slice %95 {offsets = [0, 32], sizes = [2, 32], strides = [1, 1]} : vector<2x128xf32> to vector<2x32xf32>
    %103 = arith.negf %102 : vector<2x32xf32>
    %104 = math.exp %103 : vector<2x32xf32>
    %cst_31 = arith.constant 1.000000e+00 : f32
    %105 = vector.broadcast %cst_31 : f32 to vector<2x32xf32>
    %106 = arith.addf %105, %104 : vector<2x32xf32>
    %107 = arith.divf %105, %106 : vector<2x32xf32>
    %108 = vector.extract_strided_slice %95 {offsets = [0, 64], sizes = [2, 32], strides = [1, 1]} : vector<2x128xf32> to vector<2x32xf32>
    %109 = math.tanh %108 : vector<2x32xf32>
    %110 = vector.extract_strided_slice %95 {offsets = [0, 96], sizes = [2, 32], strides = [1, 1]} : vector<2x128xf32> to vector<2x32xf32>
    %111 = arith.negf %110 : vector<2x32xf32>
    %112 = math.exp %111 : vector<2x32xf32>
    %cst_32 = arith.constant 1.000000e+00 : f32
    %113 = vector.broadcast %cst_32 : f32 to vector<2x32xf32>
    %114 = arith.addf %113, %112 : vector<2x32xf32>
    %115 = arith.divf %113, %114 : vector<2x32xf32>
    %116 = arith.mulf %107, %80 : vector<2x32xf32>
    %117 = arith.mulf %101, %109 : vector<2x32xf32>
    %118 = arith.addf %116, %117 : vector<2x32xf32>
    %119 = math.tanh %118 : vector<2x32xf32>
    %120 = arith.mulf %115, %119 : vector<2x32xf32>
    %c3_i32 = arith.constant 3 : i32
    %c2_i32_33 = arith.constant 2 : i32
    %121 = arith.muli %c2_i32_33, %c3_i32 : i32
    %c7_i32_34 = arith.constant 7 : i32
    %122 = arith.subi %c7_i32_34, %121 : i32
    %123 = arith.muli %arg0, %122 : i32
    %124 = arith.addi %c3_i32, %123 : i32
    %125 = arith.index_cast %124 : i32 to index
    %c0_35 = arith.constant 0 : index
    %c0_36 = arith.constant 0 : index
    %126 = vector.load %arg1[%125, %c0_35, %c0_36] : memref<8x2x16xbf16, #tpu.memory_space<vmem>>, vector<1x2x16xbf16>
    %127 = vector.shape_cast %126 : vector<1x2x16xbf16> to vector<2x16xbf16>
    %cst_37 = arith.constant dense<0.000000e+00> : vector<2x128xf32>
    %128 = tpu.matmul %127, %1, %cst_37 {dimension_numbers = #tpu.dot_dimension_numbers<[1], [0], [0], [1], [0, 0, 1, 1], [], []>} : vector<2x16xbf16>, vector<16x128xbf16>, vector<2x128xf32> -> vector<2x128xf32>
    %129 = arith.truncf %120 : vector<2x32xf32> to vector<2x32xbf16>
    %cst_38 = arith.constant dense<0.000000e+00> : vector<2x128xf32>
    %130 = tpu.matmul %129, %3, %cst_38 {dimension_numbers = #tpu.dot_dimension_numbers<[1], [0], [0], [1], [0, 0, 1, 1], [], []>} : vector<2x32xbf16>, vector<32x128xbf16>, vector<2x128xf32> -> vector<2x128xf32>
    %131 = arith.addf %128, %130 : vector<2x128xf32>
    %132 = vector.broadcast %5 : vector<1x128xf32> to vector<2x128xf32>
    %133 = arith.addf %131, %132 : vector<2x128xf32>
    %134 = vector.extract_strided_slice %133 {offsets = [0, 0], sizes = [2, 32], strides = [1, 1]} : vector<2x128xf32> to vector<2x32xf32>
    %135 = arith.negf %134 : vector<2x32xf32>
    %136 = math.exp %135 : vector<2x32xf32>
    %cst_39 = arith.constant 1.000000e+00 : f32
    %137 = vector.broadcast %cst_39 : f32 to vector<2x32xf32>
    %138 = arith.addf %137, %136 : vector<2x32xf32>
    %139 = arith.divf %137, %138 : vector<2x32xf32>
    %140 = vector.extract_strided_slice %133 {offsets = [0, 32], sizes = [2, 32], strides = [1, 1]} : vector<2x128xf32> to vector<2x32xf32>
    %141 = arith.negf %140 : vector<2x32xf32>
    %142 = math.exp %141 : vector<2x32xf32>
    %cst_40 = arith.constant 1.000000e+00 : f32
    %143 = vector.broadcast %cst_40 : f32 to vector<2x32xf32>
    %144 = arith.addf %143, %142 : vector<2x32xf32>
    %145 = arith.divf %143, %144 : vector<2x32xf32>
    %146 = vector.extract_strided_slice %133 {offsets = [0, 64], sizes = [2, 32], strides = [1, 1]} : vector<2x128xf32> to vector<2x32xf32>
    %147 = math.tanh %146 : vector<2x32xf32>
    %148 = vector.extract_strided_slice %133 {offsets = [0, 96], sizes = [2, 32], strides = [1, 1]} : vector<2x128xf32> to vector<2x32xf32>
    %149 = arith.negf %148 : vector<2x32xf32>
    %150 = math.exp %149 : vector<2x32xf32>
    %cst_41 = arith.constant 1.000000e+00 : f32
    %151 = vector.broadcast %cst_41 : f32 to vector<2x32xf32>
    %152 = arith.addf %151, %150 : vector<2x32xf32>
    %153 = arith.divf %151, %152 : vector<2x32xf32>
    %154 = arith.mulf %145, %118 : vector<2x32xf32>
    %155 = arith.mulf %139, %147 : vector<2x32xf32>
    %156 = arith.addf %154, %155 : vector<2x32xf32>
    %157 = math.tanh %156 : vector<2x32xf32>
    %158 = arith.mulf %153, %157 : vector<2x32xf32>
    %c4_i32 = arith.constant 4 : i32
    %c2_i32_42 = arith.constant 2 : i32
    %159 = arith.muli %c2_i32_42, %c4_i32 : i32
    %c7_i32_43 = arith.constant 7 : i32
    %160 = arith.subi %c7_i32_43, %159 : i32
    %161 = arith.muli %arg0, %160 : i32
    %162 = arith.addi %c4_i32, %161 : i32
    %163 = arith.index_cast %162 : i32 to index
    %c0_44 = arith.constant 0 : index
    %c0_45 = arith.constant 0 : index
    %164 = vector.load %arg1[%163, %c0_44, %c0_45] : memref<8x2x16xbf16, #tpu.memory_space<vmem>>, vector<1x2x16xbf16>
    %165 = vector.shape_cast %164 : vector<1x2x16xbf16> to vector<2x16xbf16>
    %cst_46 = arith.constant dense<0.000000e+00> : vector<2x128xf32>
    %166 = tpu.matmul %165, %1, %cst_46 {dimension_numbers = #tpu.dot_dimension_numbers<[1], [0], [0], [1], [0, 0, 1, 1], [], []>} : vector<2x16xbf16>, vector<16x128xbf16>, vector<2x128xf32> -> vector<2x128xf32>
    %167 = arith.truncf %158 : vector<2x32xf32> to vector<2x32xbf16>
    %cst_47 = arith.constant dense<0.000000e+00> : vector<2x128xf32>
    %168 = tpu.matmul %167, %3, %cst_47 {dimension_numbers = #tpu.dot_dimension_numbers<[1], [0], [0], [1], [0, 0, 1, 1], [], []>} : vector<2x32xbf16>, vector<32x128xbf16>, vector<2x128xf32> -> vector<2x128xf32>
    %169 = arith.addf %166, %168 : vector<2x128xf32>
    %170 = vector.broadcast %5 : vector<1x128xf32> to vector<2x128xf32>
    %171 = arith.addf %169, %170 : vector<2x128xf32>
    %172 = vector.extract_strided_slice %171 {offsets = [0, 0], sizes = [2, 32], strides = [1, 1]} : vector<2x128xf32> to vector<2x32xf32>
    %173 = arith.negf %172 : vector<2x32xf32>
    %174 = math.exp %173 : vector<2x32xf32>
    %cst_48 = arith.constant 1.000000e+00 : f32
    %175 = vector.broadcast %cst_48 : f32 to vector<2x32xf32>
    %176 = arith.addf %175, %174 : vector<2x32xf32>
    %177 = arith.divf %175, %176 : vector<2x32xf32>
    %178 = vector.extract_strided_slice %171 {offsets = [0, 32], sizes = [2, 32], strides = [1, 1]} : vector<2x128xf32> to vector<2x32xf32>
    %179 = arith.negf %178 : vector<2x32xf32>
    %180 = math.exp %179 : vector<2x32xf32>
    %cst_49 = arith.constant 1.000000e+00 : f32
    %181 = vector.broadcast %cst_49 : f32 to vector<2x32xf32>
    %182 = arith.addf %181, %180 : vector<2x32xf32>
    %183 = arith.divf %181, %182 : vector<2x32xf32>
    %184 = vector.extract_strided_slice %171 {offsets = [0, 64], sizes = [2, 32], strides = [1, 1]} : vector<2x128xf32> to vector<2x32xf32>
    %185 = math.tanh %184 : vector<2x32xf32>
    %186 = vector.extract_strided_slice %171 {offsets = [0, 96], sizes = [2, 32], strides = [1, 1]} : vector<2x128xf32> to vector<2x32xf32>
    %187 = arith.negf %186 : vector<2x32xf32>
    %188 = math.exp %187 : vector<2x32xf32>
    %cst_50 = arith.constant 1.000000e+00 : f32
    %189 = vector.broadcast %cst_50 : f32 to vector<2x32xf32>
    %190 = arith.addf %189, %188 : vector<2x32xf32>
    %191 = arith.divf %189, %190 : vector<2x32xf32>
    %192 = arith.mulf %183, %156 : vector<2x32xf32>
    %193 = arith.mulf %177, %185 : vector<2x32xf32>
    %194 = arith.addf %192, %193 : vector<2x32xf32>
    %195 = math.tanh %194 : vector<2x32xf32>
    %196 = arith.mulf %191, %195 : vector<2x32xf32>
    %c5_i32 = arith.constant 5 : i32
    %c2_i32_51 = arith.constant 2 : i32
    %197 = arith.muli %c2_i32_51, %c5_i32 : i32
    %c7_i32_52 = arith.constant 7 : i32
    %198 = arith.subi %c7_i32_52, %197 : i32
    %199 = arith.muli %arg0, %198 : i32
    %200 = arith.addi %c5_i32, %199 : i32
    %201 = arith.index_cast %200 : i32 to index
    %c0_53 = arith.constant 0 : index
    %c0_54 = arith.constant 0 : index
    %202 = vector.load %arg1[%201, %c0_53, %c0_54] : memref<8x2x16xbf16, #tpu.memory_space<vmem>>, vector<1x2x16xbf16>
    %203 = vector.shape_cast %202 : vector<1x2x16xbf16> to vector<2x16xbf16>
    %cst_55 = arith.constant dense<0.000000e+00> : vector<2x128xf32>
    %204 = tpu.matmul %203, %1, %cst_55 {dimension_numbers = #tpu.dot_dimension_numbers<[1], [0], [0], [1], [0, 0, 1, 1], [], []>} : vector<2x16xbf16>, vector<16x128xbf16>, vector<2x128xf32> -> vector<2x128xf32>
    %205 = arith.truncf %196 : vector<2x32xf32> to vector<2x32xbf16>
    %cst_56 = arith.constant dense<0.000000e+00> : vector<2x128xf32>
    %206 = tpu.matmul %205, %3, %cst_56 {dimension_numbers = #tpu.dot_dimension_numbers<[1], [0], [0], [1], [0, 0, 1, 1], [], []>} : vector<2x32xbf16>, vector<32x128xbf16>, vector<2x128xf32> -> vector<2x128xf32>
    %207 = arith.addf %204, %206 : vector<2x128xf32>
    %208 = vector.broadcast %5 : vector<1x128xf32> to vector<2x128xf32>
    %209 = arith.addf %207, %208 : vector<2x128xf32>
    %210 = vector.extract_strided_slice %209 {offsets = [0, 0], sizes = [2, 32], strides = [1, 1]} : vector<2x128xf32> to vector<2x32xf32>
    %211 = arith.negf %210 : vector<2x32xf32>
    %212 = math.exp %211 : vector<2x32xf32>
    %cst_57 = arith.constant 1.000000e+00 : f32
    %213 = vector.broadcast %cst_57 : f32 to vector<2x32xf32>
    %214 = arith.addf %213, %212 : vector<2x32xf32>
    %215 = arith.divf %213, %214 : vector<2x32xf32>
    %216 = vector.extract_strided_slice %209 {offsets = [0, 32], sizes = [2, 32], strides = [1, 1]} : vector<2x128xf32> to vector<2x32xf32>
    %217 = arith.negf %216 : vector<2x32xf32>
    %218 = math.exp %217 : vector<2x32xf32>
    %cst_58 = arith.constant 1.000000e+00 : f32
    %219 = vector.broadcast %cst_58 : f32 to vector<2x32xf32>
    %220 = arith.addf %219, %218 : vector<2x32xf32>
    %221 = arith.divf %219, %220 : vector<2x32xf32>
    %222 = vector.extract_strided_slice %209 {offsets = [0, 64], sizes = [2, 32], strides = [1, 1]} : vector<2x128xf32> to vector<2x32xf32>
    %223 = math.tanh %222 : vector<2x32xf32>
    %224 = vector.extract_strided_slice %209 {offsets = [0, 96], sizes = [2, 32], strides = [1, 1]} : vector<2x128xf32> to vector<2x32xf32>
    %225 = arith.negf %224 : vector<2x32xf32>
    %226 = math.exp %225 : vector<2x32xf32>
    %cst_59 = arith.constant 1.000000e+00 : f32
    %227 = vector.broadcast %cst_59 : f32 to vector<2x32xf32>
    %228 = arith.addf %227, %226 : vector<2x32xf32>
    %229 = arith.divf %227, %228 : vector<2x32xf32>
    %230 = arith.mulf %221, %194 : vector<2x32xf32>
    %231 = arith.mulf %215, %223 : vector<2x32xf32>
    %232 = arith.addf %230, %231 : vector<2x32xf32>
    %233 = math.tanh %232 : vector<2x32xf32>
    %234 = arith.mulf %229, %233 : vector<2x32xf32>
    %c6_i32 = arith.constant 6 : i32
    %c2_i32_60 = arith.constant 2 : i32
    %235 = arith.muli %c2_i32_60, %c6_i32 : i32
    %c7_i32_61 = arith.constant 7 : i32
    %236 = arith.subi %c7_i32_61, %235 : i32
    %237 = arith.muli %arg0, %236 : i32
    %238 = arith.addi %c6_i32, %237 : i32
    %239 = arith.index_cast %238 : i32 to index
    %c0_62 = arith.constant 0 : index
    %c0_63 = arith.constant 0 : index
    %240 = vector.load %arg1[%239, %c0_62, %c0_63] : memref<8x2x16xbf16, #tpu.memory_space<vmem>>, vector<1x2x16xbf16>
    %241 = vector.shape_cast %240 : vector<1x2x16xbf16> to vector<2x16xbf16>
    %cst_64 = arith.constant dense<0.000000e+00> : vector<2x128xf32>
    %242 = tpu.matmul %241, %1, %cst_64 {dimension_numbers = #tpu.dot_dimension_numbers<[1], [0], [0], [1], [0, 0, 1, 1], [], []>} : vector<2x16xbf16>, vector<16x128xbf16>, vector<2x128xf32> -> vector<2x128xf32>
    %243 = arith.truncf %234 : vector<2x32xf32> to vector<2x32xbf16>
    %cst_65 = arith.constant dense<0.000000e+00> : vector<2x128xf32>
    %244 = tpu.matmul %243, %3, %cst_65 {dimension_numbers = #tpu.dot_dimension_numbers<[1], [0], [0], [1], [0, 0, 1, 1], [], []>} : vector<2x32xbf16>, vector<32x128xbf16>, vector<2x128xf32> -> vector<2x128xf32>
    %245 = arith.addf %242, %244 : vector<2x128xf32>
    %246 = vector.broadcast %5 : vector<1x128xf32> to vector<2x128xf32>
    %247 = arith.addf %245, %246 : vector<2x128xf32>
    %248 = vector.extract_strided_slice %247 {offsets = [0, 0], sizes = [2, 32], strides = [1, 1]} : vector<2x128xf32> to vector<2x32xf32>
    %249 = arith.negf %248 : vector<2x32xf32>
    %250 = math.exp %249 : vector<2x32xf32>
    %cst_66 = arith.constant 1.000000e+00 : f32
    %251 = vector.broadcast %cst_66 : f32 to vector<2x32xf32>
    %252 = arith.addf %251, %250 : vector<2x32xf32>
    %253 = arith.divf %251, %252 : vector<2x32xf32>
    %254 = vector.extract_strided_slice %247 {offsets = [0, 32], sizes = [2, 32], strides = [1, 1]} : vector<2x128xf32> to vector<2x32xf32>
    %255 = arith.negf %254 : vector<2x32xf32>
    %256 = math.exp %255 : vector<2x32xf32>
    %cst_67 = arith.constant 1.000000e+00 : f32
    %257 = vector.broadcast %cst_67 : f32 to vector<2x32xf32>
    %258 = arith.addf %257, %256 : vector<2x32xf32>
    %259 = arith.divf %257, %258 : vector<2x32xf32>
    %260 = vector.extract_strided_slice %247 {offsets = [0, 64], sizes = [2, 32], strides = [1, 1]} : vector<2x128xf32> to vector<2x32xf32>
    %261 = math.tanh %260 : vector<2x32xf32>
    %262 = vector.extract_strided_slice %247 {offsets = [0, 96], sizes = [2, 32], strides = [1, 1]} : vector<2x128xf32> to vector<2x32xf32>
    %263 = arith.negf %262 : vector<2x32xf32>
    %264 = math.exp %263 : vector<2x32xf32>
    %cst_68 = arith.constant 1.000000e+00 : f32
    %265 = vector.broadcast %cst_68 : f32 to vector<2x32xf32>
    %266 = arith.addf %265, %264 : vector<2x32xf32>
    %267 = arith.divf %265, %266 : vector<2x32xf32>
    %268 = arith.mulf %259, %232 : vector<2x32xf32>
    %269 = arith.mulf %253, %261 : vector<2x32xf32>
    %270 = arith.addf %268, %269 : vector<2x32xf32>
    %271 = math.tanh %270 : vector<2x32xf32>
    %272 = arith.mulf %267, %271 : vector<2x32xf32>
    %c7_i32_69 = arith.constant 7 : i32
    %c2_i32_70 = arith.constant 2 : i32
    %273 = arith.muli %c2_i32_70, %c7_i32_69 : i32
    %c7_i32_71 = arith.constant 7 : i32
    %274 = arith.subi %c7_i32_71, %273 : i32
    %275 = arith.muli %arg0, %274 : i32
    %276 = arith.addi %c7_i32_69, %275 : i32
    %277 = arith.index_cast %276 : i32 to index
    %c0_72 = arith.constant 0 : index
    %c0_73 = arith.constant 0 : index
    %278 = vector.load %arg1[%277, %c0_72, %c0_73] : memref<8x2x16xbf16, #tpu.memory_space<vmem>>, vector<1x2x16xbf16>
    %279 = vector.shape_cast %278 : vector<1x2x16xbf16> to vector<2x16xbf16>
    %cst_74 = arith.constant dense<0.000000e+00> : vector<2x128xf32>
    %280 = tpu.matmul %279, %1, %cst_74 {dimension_numbers = #tpu.dot_dimension_numbers<[1], [0], [0], [1], [0, 0, 1, 1], [], []>} : vector<2x16xbf16>, vector<16x128xbf16>, vector<2x128xf32> -> vector<2x128xf32>
    %281 = arith.truncf %272 : vector<2x32xf32> to vector<2x32xbf16>
    %cst_75 = arith.constant dense<0.000000e+00> : vector<2x128xf32>
    %282 = tpu.matmul %281, %3, %cst_75 {dimension_numbers = #tpu.dot_dimension_numbers<[1], [0], [0], [1], [0, 0, 1, 1], [], []>} : vector<2x32xbf16>, vector<32x128xbf16>, vector<2x128xf32> -> vector<2x128xf32>
    %283 = arith.addf %280, %282 : vector<2x128xf32>
    %284 = vector.broadcast %5 : vector<1x128xf32> to vector<2x128xf32>
    %285 = arith.addf %283, %284 : vector<2x128xf32>
    %286 = vector.extract_strided_slice %285 {offsets = [0, 0], sizes = [2, 32], strides = [1, 1]} : vector<2x128xf32> to vector<2x32xf32>
    %287 = arith.negf %286 : vector<2x32xf32>
    %288 = math.exp %287 : vector<2x32xf32>
    %cst_76 = arith.constant 1.000000e+00 : f32
    %289 = vector.broadcast %cst_76 : f32 to vector<2x32xf32>
    %290 = arith.addf %289, %288 : vector<2x32xf32>
    %291 = arith.divf %289, %290 : vector<2x32xf32>
    %292 = vector.extract_strided_slice %285 {offsets = [0, 32], sizes = [2, 32], strides = [1, 1]} : vector<2x128xf32> to vector<2x32xf32>
    %293 = arith.negf %292 : vector<2x32xf32>
    %294 = math.exp %293 : vector<2x32xf32>
    %cst_77 = arith.constant 1.000000e+00 : f32
    %295 = vector.broadcast %cst_77 : f32 to vector<2x32xf32>
    %296 = arith.addf %295, %294 : vector<2x32xf32>
    %297 = arith.divf %295, %296 : vector<2x32xf32>
    %298 = vector.extract_strided_slice %285 {offsets = [0, 64], sizes = [2, 32], strides = [1, 1]} : vector<2x128xf32> to vector<2x32xf32>
    %299 = math.tanh %298 : vector<2x32xf32>
    %300 = vector.extract_strided_slice %285 {offsets = [0, 96], sizes = [2, 32], strides = [1, 1]} : vector<2x128xf32> to vector<2x32xf32>
    %301 = arith.negf %300 : vector<2x32xf32>
    %302 = math.exp %301 : vector<2x32xf32>
    %cst_78 = arith.constant 1.000000e+00 : f32
    %303 = vector.broadcast %cst_78 : f32 to vector<2x32xf32>
    %304 = arith.addf %303, %302 : vector<2x32xf32>
    %305 = arith.divf %303, %304 : vector<2x32xf32>
    %306 = arith.mulf %297, %270 : vector<2x32xf32>
    %307 = arith.mulf %291, %299 : vector<2x32xf32>
    %308 = arith.addf %306, %307 : vector<2x32xf32>
    %309 = math.tanh %308 : vector<2x32xf32>
    %310 = arith.mulf %305, %309 : vector<2x32xf32>
    %c8_i32 = arith.constant 8 : i32
    %c0_79 = arith.constant 0 : index
    %c0_80 = arith.constant 0 : index
    %c0_81 = arith.constant 0 : index
    %311 = vector.load %arg4[%c0_79, %c0_80, %c0_81] : memref<1x2x32xf32, #tpu.memory_space<vmem>>, vector<1x2x32xf32>
    %312 = vector.shape_cast %311 : vector<1x2x32xf32> to vector<2x32xf32>
    %313 = vector.shape_cast %310 : vector<2x32xf32> to vector<1x2x32xf32>
    tpu.vector_store %arg4[%c0_79, %c0_80, %c0_81], %313 {strides = array<i32>} : memref<1x2x32xf32, #tpu.memory_space<vmem>>, vector<1x2x32xf32>,
    %c0_82 = arith.constant 0 : index
    %c0_83 = arith.constant 0 : index
    %c0_84 = arith.constant 0 : index
    %314 = vector.load %arg5[%c0_82, %c0_83, %c0_84] : memref<1x2x32xf32, #tpu.memory_space<vmem>>, vector<1x2x32xf32>
    %315 = vector.shape_cast %314 : vector<1x2x32xf32> to vector<2x32xf32>
    %316 = vector.shape_cast %308 : vector<2x32xf32> to vector<1x2x32xf32>
    tpu.vector_store %arg5[%c0_82, %c0_83, %c0_84], %316 {strides = array<i32>} : memref<1x2x32xf32, #tpu.memory_space<vmem>>, vector<1x2x32xf32>,
    return
  }
  func.func @transform_0(%arg0: i32) -> (i32, i32, i32) {
    %c0_i32 = arith.constant 0 : i32
    %c0_i32_0 = arith.constant 0 : i32
    %c0_i32_1 = arith.constant 0 : i32
    %c0_i32_2 = arith.constant 0 : i32
    return %c0_i32, %c0_i32_0, %c0_i32_1 : i32, i32, i32
  }
  func.func @transform_1(%arg0: i32) -> (i32, i32, i32) {
    %c0_i32 = arith.constant 0 : i32
    %c0_i32_0 = arith.constant 0 : i32
    %c0_i32_1 = arith.constant 0 : i32
    return %arg0, %c0_i32, %c0_i32_0 : i32, i32, i32
  }
  func.func @transform_2(%arg0: i32) -> (i32, i32, i32) {
    %c0_i32 = arith.constant 0 : i32
    %c0_i32_0 = arith.constant 0 : i32
    %c0_i32_1 = arith.constant 0 : i32
    return %arg0, %c0_i32, %c0_i32_0 : i32, i32, i32
  }
  func.func @transform_3(%arg0: i32) -> (i32, i32, i32) {
    %c0_i32 = arith.constant 0 : i32
    %c0_i32_0 = arith.constant 0 : i32
    %c0_i32_1 = arith.constant 0 : i32
    return %arg0, %c0_i32, %c0_i32_0 : i32, i32, i32
  }
  func.func @transform_4(%arg0: i32) -> (i32, i32, i32) {
    %c0_i32 = arith.constant 0 : i32
    %c0_i32_0 = arith.constant 0 : i32
    %c0_i32_1 = arith.constant 0 : i32
    return %arg0, %c0_i32, %c0_i32_0 : i32, i32, i32
  }
}

module attributes {stable_mosaic.version = 11 : i64} {
  func.func @dec_lstm_fc_kernel(%arg0: i32, %arg1: memref<1xi32, #tpu.memory_space<smem>>, %arg2: memref<31x2x16xbf16, #tpu.memory_space<vmem>>, %arg3: memref<2x64xf32, #tpu.memory_space<vmem>>, %arg4: memref<2x64xf32, #tpu.memory_space<vmem>>, %arg5: memref<80x256xbf16, #tpu.memory_space<vmem>>, %arg6: memref<1x256xf32, #tpu.memory_space<vmem>>, %arg7: memref<64x128xbf16, #tpu.memory_space<vmem>>, %arg8: memref<1x128xf32, #tpu.memory_space<vmem>>, %arg9: memref<31x2x128xf32, #tpu.memory_space<vmem>>) attributes {dimension_semantics = [#tpu.dimension_semantics<arbitrary>], iteration_bounds = array<i64: 1>, scalar_prefetch = 1 : i64, scratch_operands = 0 : i64, tpu.core_type = #tpu.core_type<tc>, window_params = [{pipeline_mode = #tpu.pipeline_mode<synchronous>, transform_indices = @transform_0, window_bounds = array<i64: 31, 2, 16>}, {pipeline_mode = #tpu.pipeline_mode<synchronous>, transform_indices = @transform_1, window_bounds = array<i64: 2, 64>}, {pipeline_mode = #tpu.pipeline_mode<synchronous>, transform_indices = @transform_2, window_bounds = array<i64: 2, 64>}, {pipeline_mode = #tpu.pipeline_mode<synchronous>, transform_indices = @transform_3, window_bounds = array<i64: 80, 256>}, {pipeline_mode = #tpu.pipeline_mode<synchronous>, transform_indices = @transform_4, window_bounds = array<i64: 1, 256>}, {pipeline_mode = #tpu.pipeline_mode<synchronous>, transform_indices = @transform_5, window_bounds = array<i64: 64, 128>}, {pipeline_mode = #tpu.pipeline_mode<synchronous>, transform_indices = @transform_6, window_bounds = array<i64: 1, 128>}, {pipeline_mode = #tpu.pipeline_mode<synchronous>, transform_indices = @transform_7, window_bounds = array<i64: 31, 2, 128>}]} {
    %c0 = arith.constant 0 : index
    %c0_0 = arith.constant 0 : index
    %0 = vector.load %arg5[%c0, %c0_0] : memref<80x256xbf16, #tpu.memory_space<vmem>>, vector<16x256xbf16>
    %c16 = arith.constant 16 : index
    %c0_1 = arith.constant 0 : index
    %1 = vector.load %arg5[%c16, %c0_1] : memref<80x256xbf16, #tpu.memory_space<vmem>>, vector<64x256xbf16>
    %c0_2 = arith.constant 0 : index
    %c0_3 = arith.constant 0 : index
    %2 = vector.load %arg6[%c0_2, %c0_3] : memref<1x256xf32, #tpu.memory_space<vmem>>, vector<1x256xf32>
    %c0_4 = arith.constant 0 : index
    %c0_5 = arith.constant 0 : index
    %3 = vector.load %arg7[%c0_4, %c0_5] : memref<64x128xbf16, #tpu.memory_space<vmem>>, vector<64x128xbf16>
    %c0_6 = arith.constant 0 : index
    %c0_7 = arith.constant 0 : index
    %4 = vector.load %arg8[%c0_6, %c0_7] : memref<1x128xf32, #tpu.memory_space<vmem>>, vector<1x128xf32>
    %cst = arith.constant 0.000000e+00 : f32
    %5 = vector.broadcast %cst : f32 to vector<31x2x128xf32>
    %c0_8 = arith.constant 0 : index
    %c0_9 = arith.constant 0 : index
    %c0_10 = arith.constant 0 : index
    %6 = vector.load %arg9[%c0_8, %c0_9, %c0_10] : memref<31x2x128xf32, #tpu.memory_space<vmem>>, vector<31x2x128xf32>
    tpu.vector_store %arg9[%c0_8, %c0_9, %c0_10], %5 {strides = array<i32>} : memref<31x2x128xf32, #tpu.memory_space<vmem>>, vector<31x2x128xf32>,
    %c0_11 = arith.constant 0 : index
    %7 = memref.load %arg1[%c0_11] : memref<1xi32, #tpu.memory_space<smem>>
    %c0_12 = arith.constant 0 : index
    %c0_13 = arith.constant 0 : index
    %8 = vector.load %arg3[%c0_12, %c0_13] : memref<2x64xf32, #tpu.memory_space<vmem>>, vector<2x64xf32>
    %c0_14 = arith.constant 0 : index
    %c0_15 = arith.constant 0 : index
    %9 = vector.load %arg4[%c0_14, %c0_15] : memref<2x64xf32, #tpu.memory_space<vmem>>, vector<2x64xf32>
    %c0_i32 = arith.constant 0 : i32
    %10 = arith.subi %7, %c0_i32 : i32
    %11 = arith.addi %c0_i32, %10 : i32
    %c1_i32 = arith.constant 1 : i32
    %12:2 = scf.for %arg10 = %c0_i32 to %11 step %c1_i32 iter_args(%arg11 = %8, %arg12 = %9) -> (vector<2x64xf32>, vector<2x64xf32>)  : i32 {
      %13 = arith.index_cast %arg10 : i32 to index
      %c0_16 = arith.constant 0 : index
      %c0_17 = arith.constant 0 : index
      %14 = vector.load %arg2[%13, %c0_16, %c0_17] : memref<31x2x16xbf16, #tpu.memory_space<vmem>>, vector<1x2x16xbf16>
      %15 = vector.shape_cast %14 : vector<1x2x16xbf16> to vector<2x16xbf16>
      %cst_18 = arith.constant dense<0.000000e+00> : vector<2x256xf32>
      %16 = tpu.matmul %15, %0, %cst_18 {dimension_numbers = #tpu.dot_dimension_numbers<[1], [0], [0], [1], [0, 0, 1, 1], [], []>} : vector<2x16xbf16>, vector<16x256xbf16>, vector<2x256xf32> -> vector<2x256xf32>
      %17 = arith.truncf %arg11 : vector<2x64xf32> to vector<2x64xbf16>
      %cst_19 = arith.constant dense<0.000000e+00> : vector<2x256xf32>
      %18 = tpu.matmul %17, %1, %cst_19 {dimension_numbers = #tpu.dot_dimension_numbers<[1], [0], [0], [1], [0, 0, 1, 1], [], []>} : vector<2x64xbf16>, vector<64x256xbf16>, vector<2x256xf32> -> vector<2x256xf32>
      %19 = arith.addf %16, %18 : vector<2x256xf32>
      %20 = vector.broadcast %2 : vector<1x256xf32> to vector<2x256xf32>
      %21 = arith.addf %19, %20 : vector<2x256xf32>
      %22 = vector.extract_strided_slice %21 {offsets = [0, 0], sizes = [2, 64], strides = [1, 1]} : vector<2x256xf32> to vector<2x64xf32>
      %23 = arith.negf %22 : vector<2x64xf32>
      %24 = math.exp %23 : vector<2x64xf32>
      %cst_20 = arith.constant 1.000000e+00 : f32
      %25 = vector.broadcast %cst_20 : f32 to vector<2x64xf32>
      %26 = arith.addf %25, %24 : vector<2x64xf32>
      %27 = arith.divf %25, %26 : vector<2x64xf32>
      %28 = vector.extract_strided_slice %21 {offsets = [0, 64], sizes = [2, 64], strides = [1, 1]} : vector<2x256xf32> to vector<2x64xf32>
      %29 = arith.negf %28 : vector<2x64xf32>
      %30 = math.exp %29 : vector<2x64xf32>
      %cst_21 = arith.constant 1.000000e+00 : f32
      %31 = vector.broadcast %cst_21 : f32 to vector<2x64xf32>
      %32 = arith.addf %31, %30 : vector<2x64xf32>
      %33 = arith.divf %31, %32 : vector<2x64xf32>
      %34 = vector.extract_strided_slice %21 {offsets = [0, 128], sizes = [2, 64], strides = [1, 1]} : vector<2x256xf32> to vector<2x64xf32>
      %35 = math.tanh %34 : vector<2x64xf32>
      %36 = vector.extract_strided_slice %21 {offsets = [0, 192], sizes = [2, 64], strides = [1, 1]} : vector<2x256xf32> to vector<2x64xf32>
      %37 = arith.negf %36 : vector<2x64xf32>
      %38 = math.exp %37 : vector<2x64xf32>
      %cst_22 = arith.constant 1.000000e+00 : f32
      %39 = vector.broadcast %cst_22 : f32 to vector<2x64xf32>
      %40 = arith.addf %39, %38 : vector<2x64xf32>
      %41 = arith.divf %39, %40 : vector<2x64xf32>
      %42 = arith.mulf %33, %arg12 : vector<2x64xf32>
      %43 = arith.mulf %27, %35 : vector<2x64xf32>
      %44 = arith.addf %42, %43 : vector<2x64xf32>
      %45 = math.tanh %44 : vector<2x64xf32>
      %46 = arith.mulf %41, %45 : vector<2x64xf32>
      %47 = arith.truncf %46 : vector<2x64xf32> to vector<2x64xbf16>
      %cst_23 = arith.constant dense<0.000000e+00> : vector<2x128xf32>
      %48 = tpu.matmul %47, %3, %cst_23 {dimension_numbers = #tpu.dot_dimension_numbers<[1], [0], [0], [1], [0, 0, 1, 1], [], []>} : vector<2x64xbf16>, vector<64x128xbf16>, vector<2x128xf32> -> vector<2x128xf32>
      %49 = vector.broadcast %4 : vector<1x128xf32> to vector<2x128xf32>
      %50 = arith.addf %48, %49 : vector<2x128xf32>
      %51 = arith.index_cast %arg10 : i32 to index
      %c0_24 = arith.constant 0 : index
      %c0_25 = arith.constant 0 : index
      %52 = vector.load %arg9[%51, %c0_24, %c0_25] : memref<31x2x128xf32, #tpu.memory_space<vmem>>, vector<1x2x128xf32>
      %53 = vector.shape_cast %52 : vector<1x2x128xf32> to vector<2x128xf32>
      %54 = vector.shape_cast %50 : vector<2x128xf32> to vector<1x2x128xf32>
      tpu.vector_store %arg9[%51, %c0_24, %c0_25], %54 {strides = array<i32>} : memref<31x2x128xf32, #tpu.memory_space<vmem>>, vector<1x2x128xf32>,
      scf.yield %46, %44 : vector<2x64xf32>, vector<2x64xf32>
    }
    return
  }
  func.func @transform_0(%arg0: i32, %arg1: memref<1xi32, #tpu.memory_space<smem>>) -> (i32, i32, i32) {
    %c0_i32 = arith.constant 0 : i32
    %c0_i32_0 = arith.constant 0 : i32
    %c0_i32_1 = arith.constant 0 : i32
    %c0_i32_2 = arith.constant 0 : i32
    return %c0_i32, %c0_i32_0, %c0_i32_1 : i32, i32, i32
  }
  func.func @transform_1(%arg0: i32, %arg1: memref<1xi32, #tpu.memory_space<smem>>) -> (i32, i32) {
    %c0_i32 = arith.constant 0 : i32
    %c0_i32_0 = arith.constant 0 : i32
    %c0_i32_1 = arith.constant 0 : i32
    return %c0_i32, %c0_i32_0 : i32, i32
  }
  func.func @transform_2(%arg0: i32, %arg1: memref<1xi32, #tpu.memory_space<smem>>) -> (i32, i32) {
    %c0_i32 = arith.constant 0 : i32
    %c0_i32_0 = arith.constant 0 : i32
    %c0_i32_1 = arith.constant 0 : i32
    return %c0_i32, %c0_i32_0 : i32, i32
  }
  func.func @transform_3(%arg0: i32, %arg1: memref<1xi32, #tpu.memory_space<smem>>) -> (i32, i32) {
    %c0_i32 = arith.constant 0 : i32
    %c0_i32_0 = arith.constant 0 : i32
    %c0_i32_1 = arith.constant 0 : i32
    return %c0_i32, %c0_i32_0 : i32, i32
  }
  func.func @transform_4(%arg0: i32, %arg1: memref<1xi32, #tpu.memory_space<smem>>) -> (i32, i32) {
    %c0_i32 = arith.constant 0 : i32
    %c0_i32_0 = arith.constant 0 : i32
    %c0_i32_1 = arith.constant 0 : i32
    return %c0_i32, %c0_i32_0 : i32, i32
  }
  func.func @transform_5(%arg0: i32, %arg1: memref<1xi32, #tpu.memory_space<smem>>) -> (i32, i32) {
    %c0_i32 = arith.constant 0 : i32
    %c0_i32_0 = arith.constant 0 : i32
    %c0_i32_1 = arith.constant 0 : i32
    return %c0_i32, %c0_i32_0 : i32, i32
  }
  func.func @transform_6(%arg0: i32, %arg1: memref<1xi32, #tpu.memory_space<smem>>) -> (i32, i32) {
    %c0_i32 = arith.constant 0 : i32
    %c0_i32_0 = arith.constant 0 : i32
    %c0_i32_1 = arith.constant 0 : i32
    return %c0_i32, %c0_i32_0 : i32, i32
  }
  func.func @transform_7(%arg0: i32, %arg1: memref<1xi32, #tpu.memory_space<smem>>) -> (i32, i32, i32) {
    %c0_i32 = arith.constant 0 : i32
    %c0_i32_0 = arith.constant 0 : i32
    %c0_i32_1 = arith.constant 0 : i32
    %c0_i32_2 = arith.constant 0 : i32
    return %c0_i32, %c0_i32_0, %c0_i32_1 : i32, i32, i32
  }
}

</mosaic_0001>

<llo_original>
// kernel: seq2seq_forward.3
$region0: #{seq2seq_forward.3}
  #allocation0 [shape = 'u32[]', space=smem, size = 0x4, offset = 0x4, fixed_abs, tag = 'smem constant byte address 0x4 - core index']
  #allocation1 [shape = 'u32[144,128]{1,0:T(1,128)}', space=vmem, size = 0x12000, scoped, tag = 'internal scratch']
  #allocation2 [shape = 's32[1]{0}', space=sflag, size = 0x4, scoped, tag = 'scoped memory for seq2seq_forward.3']
  #allocation3 [shape = 's32[1]{0:T(128)S(6)}', space=smem, size = 0x200, scoped, tag = 'prefetched SMEM operand 0']
  %s0 = inlined_call_operand.<no memory space> [shape: s32[1], index: 0, kind: input, shape index: {}]
  %s1 = inlined_call_operand.vmem [shape: bf16[31,2,16], index: 1, kind: input, shape index: {}]
  %s2 = inlined_call_operand.vmem [shape: f32[2,64], index: 2, kind: input, shape index: {}]
  %s3 = inlined_call_operand.vmem [shape: f32[2,64], index: 3, kind: input, shape index: {}]
  %s4 = inlined_call_operand.vmem [shape: bf16[80,256], index: 4, kind: input, shape index: {}]
  %s5 = inlined_call_operand.vmem [shape: f32[1,256], index: 5, kind: input, shape index: {}]
  %s6 = inlined_call_operand.vmem [shape: bf16[64,128], index: 6, kind: input, shape index: {}]
  %s7 = inlined_call_operand.vmem [shape: f32[1,128], index: 7, kind: input, shape index: {}]
  %s8 = inlined_call_operand.hbm [shape: f32[31,2,128], index: 8, kind: output, shape index: {}]
  %s9 = sld [smem:[#allocation0]]
  $region45: #{seq2seq_forward.3} parent=0
    _
  %s11 = ssub.s32 1, %s9
  %s12 = scalar_select 0, %s11, %s9
  %13 = sst [smem:[#allocation3]] %s0
  $region1: #{seq2seq_forward.3} parent=0
    #allocation4 [shape = 'u8[31744]{0}', space=vmem, size = 0x7c00, scoped, tag = 'output window, operand 0, single buffered']
    #allocation5 [shape = 's32[1]{0}', space=sflag, size = 0x4, scoped, tag = 'scoped memory for seq2seq_forward.3']
    %14 = vsyncpa [#allocation5], 0
    // Predicated region
    $region2: #{seq2seq_forward.3} parent=1 // pred_check
      _
    $region3: #{seq2seq_forward.3} parent=1 // pred_check_branch
      %16 = sbr.rel (0) target = $region5
    $region4: #{seq2seq_forward.3} parent=1 // pred_region
      _
    $region5: #{seq2seq_forward.3} parent=1 // pred_fallthru
      _
    // Predicated region
    $region6: #{seq2seq_forward.3} parent=1 // pred_check
      _
    $region7: #{seq2seq_forward.3} parent=1 // pred_check_branch
      %18 = sbr.rel (0) target = $region9
    $region8: #{seq2seq_forward.3} parent=1 // pred_region
      _
    $region9: #{seq2seq_forward.3} parent=1 // pred_fallthru
      _
    // Predicated region
    $region10: #{seq2seq_forward.3} parent=1 // pred_check
      _
    $region11: #{seq2seq_forward.3} parent=1 // pred_check_branch
      %20 = sbr.rel (0) target = $region13
    $region12: #{seq2seq_forward.3} parent=1 // pred_region
      _
    $region13: #{seq2seq_forward.3} parent=1 // pred_fallthru
      _
    // Predicated region
    $region14: #{seq2seq_forward.3} parent=1 // pred_check
      _
    $region15: #{seq2seq_forward.3} parent=1 // pred_check_branch
      %22 = sbr.rel (0) target = $region17
    $region16: #{seq2seq_forward.3} parent=1 // pred_region
      _
    $region17: #{seq2seq_forward.3} parent=1 // pred_fallthru
      _
    // Predicated region
    $region18: #{seq2seq_forward.3} parent=1 // pred_check
      _
    $region19: #{seq2seq_forward.3} parent=1 // pred_check_branch
      %24 = sbr.rel (0) target = $region21
    $region20: #{seq2seq_forward.3} parent=1 // pred_region
      _
    $region21: #{seq2seq_forward.3} parent=1 // pred_fallthru
      _
    // Predicated region
    $region22: #{seq2seq_forward.3} parent=1 // pred_check
      _
    $region23: #{seq2seq_forward.3} parent=1 // pred_check_branch
      %26 = sbr.rel (0) target = $region25
    $region24: #{seq2seq_forward.3} parent=1 // pred_region
      _
    $region25: #{seq2seq_forward.3} parent=1 // pred_fallthru
      _
    // Predicated region
    $region26: #{seq2seq_forward.3} parent=1 // pred_check
      _
    $region27: #{seq2seq_forward.3} parent=1 // pred_check_branch
      %28 = sbr.rel (0) target = $region29
    $region28: #{seq2seq_forward.3} parent=1 // pred_region
      _
    $region29: #{seq2seq_forward.3} parent=1 // pred_fallthru
      _
    %v30 = vld [vmem:[%s4] sm:$0xff]
    %v31 = vld [vmem:[%s4 + $0x8] sm:$0xff]
    %v32 = vld [vmem:[%s4 + $0x10] sm:$0xff]
    %v33 = vld [vmem:[%s4 + $0x18] sm:$0xff]
    %v34 = vld [vmem:[%s4 + $0x20] sm:$0xff]
    %v35 = vld [vmem:[%s4 + $0x28] sm:$0xff]
    %v36 = vld [vmem:[%s4 + $0x30] sm:$0xff]
    %v37 = vld [vmem:[%s4 + $0x38] sm:$0xff]
    %v38 = vld [vmem:[%s4 + $0x40] sm:$0xff]
    %v39 = vld [vmem:[%s4 + $0x48] sm:$0xff]
    %v40 = vld [vmem:[%s5] sm:$0x3]
    %v41 = vld [vmem:[%s6] sm:$0xf]
    %v42 = vld [vmem:[%s6 + $0x4] sm:$0xf]
    %v43 = vld [vmem:[%s6 + $0x8] sm:$0xf]
    %v44 = vld [vmem:[%s6 + $0xc] sm:$0xf]
    %v45 = vld [vmem:[%s6 + $0x10] sm:$0xf]
    %v46 = vld [vmem:[%s6 + $0x14] sm:$0xf]
    %v47 = vld [vmem:[%s6 + $0x18] sm:$0xf]
    %v48 = vld [vmem:[%s6 + $0x1c] sm:$0xf]
    %v49 = vld [vmem:[%s7] sm:$0x1]
    %50 = vst [vmem:[#allocation4] sm:$0x3] 0.0
    %51 = vst [vmem:[#allocation4 + $0x2] sm:$0x3] 0.0
    %52 = vst [vmem:[#allocation4 + $0x4] sm:$0x3] 0.0
    %53 = vst [vmem:[#allocation4 + $0x6] sm:$0x3] 0.0
    %54 = vst [vmem:[#allocation4 + $0x8] sm:$0x3] 0.0
    %55 = vst [vmem:[#allocation4 + $0xa] sm:$0x3] 0.0
    %56 = vst [vmem:[#allocation4 + $0xc] sm:$0x3] 0.0
    %57 = vst [vmem:[#allocation4 + $0xe] sm:$0x3] 0.0
    %58 = vst [vmem:[#allocation4 + $0x10] sm:$0x3] 0.0
    %59 = vst [vmem:[#allocation4 + $0x12] sm:$0x3] 0.0
    %60 = vst [vmem:[#allocation4 + $0x14] sm:$0x3] 0.0
    %61 = vst [vmem:[#allocation4 + $0x16] sm:$0x3] 0.0
    %62 = vst [vmem:[#allocation4 + $0x18] sm:$0x3] 0.0
    %63 = vst [vmem:[#allocation4 + $0x1a] sm:$0x3] 0.0
    %64 = vst [vmem:[#allocation4 + $0x1c] sm:$0x3] 0.0
    %65 = vst [vmem:[#allocation4 + $0x1e] sm:$0x3] 0.0
    %66 = vst [vmem:[#allocation4 + $0x20] sm:$0x3] 0.0
    %67 = vst [vmem:[#allocation4 + $0x22] sm:$0x3] 0.0
    %68 = vst [vmem:[#allocation4 + $0x24] sm:$0x3] 0.0
    %69 = vst [vmem:[#allocation4 + $0x26] sm:$0x3] 0.0
    %70 = vst [vmem:[#allocation4 + $0x28] sm:$0x3] 0.0
    %71 = vst [vmem:[#allocation4 + $0x2a] sm:$0x3] 0.0
    %72 = vst [vmem:[#allocation4 + $0x2c] sm:$0x3] 0.0
    %73 = vst [vmem:[#allocation4 + $0x2e] sm:$0x3] 0.0
    %74 = vst [vmem:[#allocation4 + $0x30] sm:$0x3] 0.0
    %75 = vst [vmem:[#allocation4 + $0x32] sm:$0x3] 0.0
    %76 = vst [vmem:[#allocation4 + $0x34] sm:$0x3] 0.0
    %77 = vst [vmem:[#allocation4 + $0x36] sm:$0x3] 0.0
    %78 = vst [vmem:[#allocation4 + $0x38] sm:$0x3] 0.0
    %79 = vst [vmem:[#allocation4 + $0x3a] sm:$0x3] 0.0
    %80 = vst [vmem:[#allocation4 + $0x3c] sm:$0x3] 0.0
    %s81 = sld [smem:[#allocation3]]
    %v82 = vld [vmem:[%s2] sm:$0x3]
    %v83 = vld [vmem:[%s3] sm:$0x3]
    // While loop
    $region30: #{seq2seq_forward.3} parent=1 // loop_pre_header
      _
    $region31: #{seq2seq_forward.3} parent=1 // loop_header
      %s85 = sphi 0, %s87
      %p86 = scmp.ge.s32.totalorder %s85, %s81
      %v90 = vphi %v82, %v356
      %v91 = vphi %v83, %v360
    $region32: #{seq2seq_forward.3} parent=1 // loop_header_branch
      %89 = sbr.rel (%p86) target = $region36
    $region33: #{seq2seq_forward.3} parent=1 // loop_body
      %s92 = scalar_lea.vmem %s1, %s85
      %v93 = vld [vmem:[%s92] sm:$0x1]
      %v94 = vpack.c.bf16 %v90, %v90
      %v103 = vunpack.c.l.b16 %v32
      %v104 = vunpack.c.h.b16 %v32
      %v105 = vunpack.c.l.b16 %v33
      %v106 = vunpack.c.h.b16 %v33
      %v107 = vunpack.c.l.b16 %v34
      %v108 = vunpack.c.h.b16 %v34
      %v109 = vunpack.c.l.b16 %v35
      %v110 = vunpack.c.h.b16 %v35
      %v111 = vunpack.c.l.b16 %v36
      %v112 = vunpack.c.h.b16 %v36
      %v113 = vunpack.c.l.b16 %v37
      %v114 = vunpack.c.h.b16 %v37
      %v115 = vunpack.c.l.b16 %v38
      %v116 = vunpack.c.h.b16 %v38
      %v117 = vunpack.c.l.b16 %v39
      %v118 = vunpack.c.h.b16 %v39
      %v119 = vpack.c.b16 %v105, %v103
      %v120 = vpack.c.b16 %v106, %v104
      %v121 = vpack.c.b16 %v109, %v107
      %v122 = vpack.c.b16 %v110, %v108
      %v123 = vpack.c.b16 %v113, %v111
      %v124 = vpack.c.b16 %v114, %v112
      %v125 = vpack.c.b16 %v117, %v115
      %v126 = vpack.c.b16 %v118, %v116
      %vm135 = vcmask 523264
      %v137 = vsel %vm135, %v94, 0
      %139 = vmatprep.subr.bf16.mxu0 %v120
      %140 = vmatpush1.bf16.msra.mxu0 %v119
      %141 = vmatprep.subr.bf16.mxu0 %v122
      %142 = vmatpush1.bf16.msra.mxu0 %v121
      %143 = vmatprep.subr.bf16.mxu0 %v124
      %144 = vmatpush1.bf16.msra.mxu0 %v123
      %145 = vmatprep.subr.bf16.mxu0 %v126
      %146 = vmatpush1.bf16.msra.mxu0 %v125
      %147 = vmatprep.subr.bf16.mxu0 0
      %148 = vmatpush1.bf16.msra.mxu0 0
      %149 = vmatprep.subr.bf16.mxu0 0
      %150 = vmatpush1.bf16.msra.mxu0 0
      %151 = vmatprep.subr.bf16.mxu0 0
      %152 = vmatpush1.bf16.msra.mxu0 0
      %153 = vmatprep.subr.bf16.mxu0 0
      %154 = vmatpush1.bf16.msra.mxu0 0
      %155 = vmatprep.subr.bf16.mxu0 0
      %156 = vmatpush1.bf16.msra.mxu0 0
      %157 = vmatprep.subr.bf16.mxu0 0
      %158 = vmatpush1.bf16.msra.mxu0 0
      %159 = vmatprep.subr.bf16.mxu0 0
      %160 = vmatpush1.bf16.msra.mxu0 0
      %161 = vmatprep.subr.bf16.mxu0 0
      %162 = vmatpush1.bf16.msra.mxu0 0
      %163 = vmatprep.subr.bf16.mxu0 0
      %164 = vmatpush1.bf16.msra.mxu0 0
      %165 = vmatprep.subr.bf16.mxu0 0
      %166 = vmatpush1.bf16.msra.mxu0 0
      %167 = vmatprep.subr.bf16.mxu0 0
      %168 = vmatpush1.bf16.msra.mxu0 0
      %169 = vmatprep.subr.bf16.mxu0 0
      %170 = vmatpush1.bf16.msra.mxu0 0
      %171 = vmatprep.mubr.bf16.mxu0 0
      %172 = vmatmul.mubr.bf16.gmra.mrb[0].mxu0 %v137
      %v173 = vpop.f32.mrb[0].mxu0
      %v174 = vadd.f32 0.0, %v173
      %v175 = vpop.f32.mrb[0].mxu0
      %v176 = vadd.f32 0.0, %v175
      %v177 = vpop.f32.mrb[0].mxu0
      %v178 = vpop.f32.mrb[0].mxu0
      %179 = vdwg.mxu0
      %v182 = vunpack.c.l.b16 %v30
      %v183 = vunpack.c.h.b16 %v30
      %v184 = vunpack.c.l.b16 %v31
      %v185 = vunpack.c.h.b16 %v31
      %v186 = vpack.c.b16 %v184, %v182
      %v187 = vpack.c.b16 %v185, %v183
      %vm190 = vcmask 130048
      %v192 = vsel %vm190, %v93, 0
      %194 = vmatprep.subr.bf16.mxu0 %v187
      %195 = vmatpush1.bf16.msra.mxu0 %v186
      %196 = vmatprep.subr.bf16.mxu0 0
      %197 = vmatpush1.bf16.msra.mxu0 0
      %198 = vmatprep.subr.bf16.mxu0 0
      %199 = vmatpush1.bf16.msra.mxu0 0
      %200 = vmatprep.subr.bf16.mxu0 0
      %201 = vmatpush1.bf16.msra.mxu0 0
      %202 = vmatprep.subr.bf16.mxu0 0
      %203 = vmatpush1.bf16.msra.mxu0 0
      %204 = vmatprep.subr.bf16.mxu0 0
      %205 = vmatpush1.bf16.msra.mxu0 0
      %206 = vmatprep.subr.bf16.mxu0 0
      %207 = vmatpush1.bf16.msra.mxu0 0
      %208 = vmatprep.subr.bf16.mxu0 0
      %209 = vmatpush1.bf16.msra.mxu0 0
      %210 = vmatprep.subr.bf16.mxu0 0
      %211 = vmatpush1.bf16.msra.mxu0 0
      %212 = vmatprep.subr.bf16.mxu0 0
      %213 = vmatpush1.bf16.msra.mxu0 0
      %214 = vmatprep.subr.bf16.mxu0 0
      %215 = vmatpush1.bf16.msra.mxu0 0
      %216 = vmatprep.subr.bf16.mxu0 0
      %217 = vmatpush1.bf16.msra.mxu0 0
      %218 = vmatprep.subr.bf16.mxu0 0
      %219 = vmatpush1.bf16.msra.mxu0 0
      %220 = vmatprep.subr.bf16.mxu0 0
      %221 = vmatpush1.bf16.msra.mxu0 0
      %222 = vmatprep.subr.bf16.mxu0 0
      %223 = vmatpush1.bf16.msra.mxu0 0
      %224 = vmatprep.subr.bf16.mxu0 0
      %225 = vmatpush1.bf16.msra.mxu0 0
      %226 = vmatprep.mubr.bf16.mxu0 0
      %227 = vmatmul.mubr.bf16.gmra.mrb[0].mxu0 %v192
      %v228 = vpop.f32.mrb[0].mxu0
      %v229 = vadd.f32 %v174, %v228
      %v230 = vpop.f32.mrb[0].mxu0
      %v231 = vadd.f32 %v176, %v230
      %v232 = vpop.f32.mrb[0].mxu0
      %v233 = vpop.f32.mrb[0].mxu0
      %234 = vdwg.mxu0
      %v236 = vlaneseq
      %v237 = vshrl.u32 %v236, 7
      %v238 = vsub.s32 0, %v237
      %v239 = vrot.slane %v40, %v238
      %v240 = vlaneseq
      %v241 = vshrl.u32 %v240, 7
      %v242 = vsub.s32 1, %v241
      %v243 = vrot.slane %v40, %v242
      %v246 = vadd.f32 %v229, %v239
      %v247 = vadd.f32 %v231, %v243
      %v248 = vxor.u32 %v246, 2147483648
      %v249 = vmul.f32 %v248, 1.442695
      %v250 = vpow.pop %v249
      %v251 = vadd.f32 %v250, 1.0
      %v252 = vrcp.pop %v251
      %v253 = vmul.f32 1.0, %v252
      %v254 = vtanh.pop %v247
      %v255 = vxor.u32 %v247, 2147483648
      %v256 = vmul.f32 %v255, 1.442695
      %v257 = vpow.pop %v256
      %v258 = vadd.f32 %v257, 1.0
      %v259 = vrcp.pop %v258
      %v260 = vmul.f32 1.0, %v259
      %262 = vrot.lane.b32.xlu0 %v91, 64
      %v263 = vpop.permute.xlu0 %262
      %v265 = vmul.f32 %v253, %v263
      %v266 = vmul.f32 %v253, %v254
      %268 = vrot.lane.b32.xlu0 %v266, 64
      %v269 = vpop.permute.xlu0 %268
      %v271 = vadd.f32 %v265, %v269
      %v272 = vtanh.pop %v271
      %v273 = vmul.f32 %v260, %v272
      %v274 = vpack.c.bf16 %v273, %v273
      %v276 = vlaneseq
      %v277 = vshrl.u32 %v276, 7
      %v278 = vsub.s32 0, %v277
      %v279 = vrot.slane %v49, %v278
      %282 = vrot.lane.b32.xlu0 %v274, 64
      %v283 = vpop.permute.xlu0 %282
      %v292 = vunpack.c.l.b16 %v41
      %v293 = vunpack.c.l.b16 %v42
      %v294 = vunpack.c.l.b16 %v43
      %v295 = vunpack.c.l.b16 %v44
      %v296 = vunpack.c.l.b16 %v45
      %v297 = vunpack.c.l.b16 %v46
      %v298 = vunpack.c.l.b16 %v47
      %v299 = vunpack.c.l.b16 %v48
      %v300 = vpack.c.b16 %v293, %v292
      %v301 = vpack.c.b16 %v295, %v294
      %v302 = vpack.c.b16 %v297, %v296
      %v303 = vpack.c.b16 %v299, %v298
      %v309 = vsel %vm135, %v283, 0
      %311 = vmatprep.subr.bf16.mxu0 0
      %312 = vmatpush1.bf16.msra.mxu0 %v300
      %313 = vmatprep.subr.bf16.mxu0 0
      %314 = vmatpush1.bf16.msra.mxu0 %v301
      %315 = vmatprep.subr.bf16.mxu0 0
      %316 = vmatpush1.bf16.msra.mxu0 %v302
      %317 = vmatprep.subr.bf16.mxu0 0
      %318 = vmatpush1.bf16.msra.mxu0 %v303
      %319 = vmatprep.subr.bf16.mxu0 0
      %320 = vmatpush1.bf16.msra.mxu0 0
      %321 = vmatprep.subr.bf16.mxu0 0
      %322 = vmatpush1.bf16.msra.mxu0 0
      %323 = vmatprep.subr.bf16.mxu0 0
      %324 = vmatpush1.bf16.msra.mxu0 0
      %325 = vmatprep.subr.bf16.mxu0 0
      %326 = vmatpush1.bf16.msra.mxu0 0
      %327 = vmatprep.subr.bf16.mxu0 0
      %328 = vmatpush1.bf16.msra.mxu0 0
      %329 = vmatprep.subr.bf16.mxu0 0
      %330 = vmatpush1.bf16.msra.mxu0 0
      %331 = vmatprep.subr.bf16.mxu0 0
      %332 = vmatpush1.bf16.msra.mxu0 0
      %333 = vmatprep.subr.bf16.mxu0 0
      %334 = vmatpush1.bf16.msra.mxu0 0
      %335 = vmatprep.subr.bf16.mxu0 0
      %336 = vmatpush1.bf16.msra.mxu0 0
      %337 = vmatprep.subr.bf16.mxu0 0
      %338 = vmatpush1.bf16.msra.mxu0 0
      %339 = vmatprep.subr.bf16.mxu0 0
      %340 = vmatpush1.bf16.msra.mxu0 0
      %341 = vmatprep.subr.bf16.mxu0 0
      %342 = vmatpush1.bf16.msra.mxu0 0
      %343 = vmatprep.mubr.bf16.mxu0 0
      %344 = vmatmul.mubr.bf16.gmra.mrb[0].mxu0 %v309
      %v345 = vpop.f32.mrb[0].mxu0
      %v346 = vadd.f32 %v279, %v345
      %v347 = vpop.f32.mrb[0].mxu0
      %v348 = vpop.f32.mrb[0].mxu0
      %v349 = vpop.f32.mrb[0].mxu0
      %350 = vdwg.mxu0
      %s351 = smul.u32 %s85, 2
      %s352 = scalar_lea.vmem [#allocation4], %s351
      %353 = vst [vmem:[%s352] sm:$0x3] %v346
      %355 = vrot.lane.b32.xlu0 %v273, 64
      %v356 = vpop.permute.xlu0 %355
      %359 = vrot.lane.b32.xlu0 %v271, 64
      %v360 = vpop.permute.xlu0 %359
    $region34: #{seq2seq_forward.3} parent=1 // loop_footer
      %s87 = sadd.s32 %s85, 1
    $region35: #{seq2seq_forward.3} parent=1 // loop_footer_branch
      %84 = sbr.rel target = $region31
    $region36: #{seq2seq_forward.3} parent=1 // loop_exit
      _
    // Predicated region
    $region37: #{seq2seq_forward.3} parent=1 // pred_check
      _
    $region38: #{seq2seq_forward.3} parent=1 // pred_check_branch
      %363 = sbr.rel (0) target = $region40
    $region39: #{seq2seq_forward.3} parent=1 // pred_region
      %s365 = ssub.s32 992, 992
      %366 = vsyncadd [#allocation5], %s365
      %s367 = sshll.u32 [#allocation4], 4
      %s368 = int_to_ptr.vmem [resolvable:$true] %s367
      %373 = dma.vmem_to_hbm [thread:$0]  %s368, 992, %s8, [#allocation5], 32, 32, 2
    $region40: #{seq2seq_forward.3} parent=1 // pred_fallthru
      _
    // Predicated region
    $region41: #{seq2seq_forward.3} parent=1 // pred_check
      _
    $region42: #{seq2seq_forward.3} parent=1 // pred_check_branch
      %375 = sbr.rel (0) target = $region44
    $region43: #{seq2seq_forward.3} parent=1 // pred_region
      %376 = dma.done [#allocation5], 992
    $region44: #{seq2seq_forward.3} parent=1 // pred_fallthru
      _
    %377 = vsyncpa [#allocation5], 1

// kernel: seq2seq_forward.2
$region0: #{seq2seq_forward.2}
  #allocation0 [shape = 'u32[]', space=smem, size = 0x4, offset = 0x4, fixed_abs, tag = 'smem constant byte address 0x4 - core index']
  #allocation1 [shape = 'u32[144,128]{1,0:T(1,128)}', space=vmem, size = 0x12000, scoped, tag = 'internal scratch']
  %s0 = inlined_call_operand.vmem [shape: bf16[8,2,16], index: 0, kind: input, shape index: {}]
  %s1 = inlined_call_operand.vmem [shape: bf16[2,48,128], index: 1, kind: input, shape index: {}]
  %s2 = inlined_call_operand.vmem [shape: f32[2,1,128], index: 2, kind: input, shape index: {}]
  %s3 = inlined_call_operand.vmem [shape: f32[2,2,32], index: 3, kind: output, shape index: {0}]
  %s4 = inlined_call_operand.vmem [shape: f32[2,2,32], index: 4, kind: output, shape index: {1}]
  %5 = xla_tuple %s3, %s4
  %s6 = sld [smem:[#allocation0]]
  $region53: #{seq2seq_forward.2} parent=0
    _
  %s8 = ssub.s32 1, %s6
  %s9 = scalar_select 0, %s8, %s6
  loop: start=0, step=1, limit=4
  $region2: #{seq2seq_forward.2} parent=0 // loop_pre_header
    _
  $region3: #{seq2seq_forward.2} parent=0 // loop_header
    %s11 = sphi 0, %s15
    %p12 = scmp.ge.s32.totalorder %s11, 4
    %s19 = sphi 0, %s19
    %s21 = sphi 0, %s19
    %s22 = sphi 0, %s21
    %s36 = sphi 0, %s22
    %s42 = sphi 0, %s44
    %s45 = sphi 0, %s42
    %s46 = sphi 0, %s45
    %s62 = sphi 0, %s46
    %s68 = sphi 0, %s70
    %s71 = sphi 0, %s68
    %s72 = sphi 0, %s71
    %s88 = sphi 0, %s72
    %s94 = sphi 0, %s96
    %s97 = sphi 0, %s94
    %s98 = sphi 0, %s97
    %s114 = sphi 0, %s98
    %s120 = sphi 0, %s122
    %s123 = sphi 0, %s120
    %s124 = sphi 0, %s123
    %s140 = sphi 0, %s124
  $region4: #{seq2seq_forward.2} parent=0 // loop_header_branch
    %14 = sbr.rel (%p12) target = $region8
  $region5: #{seq2seq_forward.2} parent=0 // loop_body
    %s16 = ssub.s32 %s11, 1
    %s17 = ssub.s32 %s11, 2
    %s18 = sadd.s32 %s11, 1
    %s20 = sadd.s32 %s19, 1
    %p23 = scmp.eq.s32.totalorder %s11, 1
    %p24 = scmp.ne.s32.totalorder %s19, %s21
    %p25 = scmp.eq.s32.totalorder %s11, 0
    %p26 = por %p24, %p25
    %p27 = scmp.ne.s32.totalorder %s19, %s21
    %p28 = scmp.eq.s32.totalorder %s16, 1
    %p29 = por %p27, %p28
    %p30 = scmp.ne.s32.totalorder %s21, %s22
    %p31 = scmp.eq.s32.totalorder %s16, 0
    %p32 = por %p30, %p31
    %p33 = scmp.ne.s32.totalorder %s21, %s22
    %p34 = scmp.eq.s32.totalorder %s17, 1
    %p35 = por %p33, %p34
    %p37 = scmp.ne.s32.totalorder %s22, %s36
    %p38 = scmp.eq.s32.totalorder %s17, 0
    %p39 = por %p37, %p38
    %s40 = ssub.s32 %s11, %s18
    %p41 = scmp.eq.s32.totalorder %s40, 0
    %s43 = sadd.s32 %s42, 1
    %s44 = scalar_select %p41, %s42, %s43
    %p47 = pneg %p41
    %p48 = scmp.eq.s32.totalorder %s11, 1
    %p49 = por %p47, %p48
    %p50 = scmp.ne.s32.totalorder %s42, %s45
    %p51 = scmp.eq.s32.totalorder %s11, 0
    %p52 = por %p50, %p51
    %p53 = scmp.ne.s32.totalorder %s42, %s45
    %p54 = scmp.eq.s32.totalorder %s16, 1
    %p55 = por %p53, %p54
    %p56 = scmp.ne.s32.totalorder %s45, %s46
    %p57 = scmp.eq.s32.totalorder %s16, 0
    %p58 = por %p56, %p57
    %p59 = scmp.ne.s32.totalorder %s45, %s46
    %p60 = scmp.eq.s32.totalorder %s17, 1
    %p61 = por %p59, %p60
    %p63 = scmp.ne.s32.totalorder %s46, %s62
    %p64 = scmp.eq.s32.totalorder %s17, 0
    %p65 = por %p63, %p64
    %s66 = ssub.s32 %s11, %s18
    %p67 = scmp.eq.s32.totalorder %s66, 0
    %s69 = sadd.s32 %s68, 1
    %s70 = scalar_select %p67, %s68, %s69
    %p73 = pneg %p67
    %p74 = scmp.eq.s32.totalorder %s11, 1
    %p75 = por %p73, %p74
    %p76 = scmp.ne.s32.totalorder %s68, %s71
    %p77 = scmp.eq.s32.totalorder %s11, 0
    %p78 = por %p76, %p77
    %p79 = scmp.ne.s32.totalorder %s68, %s71
    %p80 = scmp.eq.s32.totalorder %s16, 1
    %p81 = por %p79, %p80
    %p82 = scmp.ne.s32.totalorder %s71, %s72
    %p83 = scmp.eq.s32.totalorder %s16, 0
    %p84 = por %p82, %p83
    %p85 = scmp.ne.s32.totalorder %s71, %s72
    %p86 = scmp.eq.s32.totalorder %s17, 1
    %p87 = por %p85, %p86
    %p89 = scmp.ne.s32.totalorder %s72, %s88
    %p90 = scmp.eq.s32.totalorder %s17, 0
    %p91 = por %p89, %p90
    %s92 = ssub.s32 %s11, %s18
    %p93 = scmp.eq.s32.totalorder %s92, 0
    %s95 = sadd.s32 %s94, 1
    %s96 = scalar_select %p93, %s94, %s95
    %p99 = pneg %p93
    %p100 = scmp.eq.s32.totalorder %s11, 1
    %p101 = por %p99, %p100
    %p102 = scmp.ne.s32.totalorder %s94, %s97
    %p103 = scmp.eq.s32.totalorder %s11, 0
    %p104 = por %p102, %p103
    %p105 = scmp.ne.s32.totalorder %s94, %s97
    %p106 = scmp.eq.s32.totalorder %s16, 1
    %p107 = por %p105, %p106
    %p108 = scmp.ne.s32.totalorder %s97, %s98
    %p109 = scmp.eq.s32.totalorder %s16, 0
    %p110 = por %p108, %p109
    %p111 = scmp.ne.s32.totalorder %s97, %s98
    %p112 = scmp.eq.s32.totalorder %s17, 1
    %p113 = por %p111, %p112
    %p115 = scmp.ne.s32.totalorder %s98, %s114
    %p116 = scmp.eq.s32.totalorder %s17, 0
    %p117 = por %p115, %p116
    %s118 = ssub.s32 %s11, %s18
    %p119 = scmp.eq.s32.totalorder %s118, 0
    %s121 = sadd.s32 %s120, 1
    %s122 = scalar_select %p119, %s120, %s121
    %p125 = pneg %p119
    %p126 = scmp.eq.s32.totalorder %s11, 1
    %p127 = por %p125, %p126
    %p128 = scmp.ne.s32.totalorder %s120, %s123
    %p129 = scmp.eq.s32.totalorder %s11, 0
    %p130 = por %p128, %p129
    %p131 = scmp.ne.s32.totalorder %s120, %s123
    %p132 = scmp.eq.s32.totalorder %s16, 1
    %p133 = por %p131, %p132
    %p134 = scmp.ne.s32.totalorder %s123, %s124
    %p135 = scmp.eq.s32.totalorder %s16, 0
    %p136 = por %p134, %p135
    %p137 = scmp.ne.s32.totalorder %s123, %s124
    %p138 = scmp.eq.s32.totalorder %s17, 1
    %p139 = por %p137, %p138
    %p141 = scmp.ne.s32.totalorder %s124, %s140
    %p142 = scmp.eq.s32.totalorder %s17, 0
    %p143 = por %p141, %p142
    %p144 = scmp.le.s32.totalorder 1, %s11
    %p145 = scmp.lt.s32.totalorder %s11, 3
    %p146 = pnand %p144, %p145
    %p147 = pneg %p146
    // Predicated region
    $region9: #{seq2seq_forward.2} parent=5 // pred_check
      _
    $region10: #{seq2seq_forward.2} parent=5 // pred_check_branch
      %149 = sbr.rel (%p146) target = $region12
    $region11: #{seq2seq_forward.2} parent=5 // pred_region
      %s150 = ssub.s32 %s11, 1
      // Predicated region
      $region13: #{seq2seq_forward.2} parent=11 // pred_check
        %p151 = pneg %p32
      $region14: #{seq2seq_forward.2} parent=11 // pred_check_branch
        %153 = sbr.rel (%p151) target = $region16
      $region15: #{seq2seq_forward.2} parent=11 // pred_region
        _
      $region16: #{seq2seq_forward.2} parent=11 // pred_fallthru
        _
    $region12: #{seq2seq_forward.2} parent=5 // pred_fallthru
      _
    %p154 = scmp.lt.s32.totalorder %s11, 2
    // Predicated region
    $region17: #{seq2seq_forward.2} parent=5 // pred_check
      %p155 = pneg %p154
    $region18: #{seq2seq_forward.2} parent=5 // pred_check_branch
      %157 = sbr.rel (%p155) target = $region20
    $region19: #{seq2seq_forward.2} parent=5 // pred_region
      // Predicated region
      $region21: #{seq2seq_forward.2} parent=19 // pred_check
        %p158 = pneg %p52
      $region22: #{seq2seq_forward.2} parent=19 // pred_check_branch
        %160 = sbr.rel (%p158) target = $region24
      $region23: #{seq2seq_forward.2} parent=19 // pred_region
        %p161 = scmp.lt.s32.totalorder %s11, 1
        %s162 = scalar_select %p161, %s11, 1
        %s163 = smul.addr %s162, 6
        %s164 = smul.addr %s163, 4
        %s165 = scalar_lea.vmem %s1, %s164
      $region24: #{seq2seq_forward.2} parent=19 // pred_fallthru
        _
      // Predicated region
      $region25: #{seq2seq_forward.2} parent=19 // pred_check
        %p166 = pneg %p78
      $region26: #{seq2seq_forward.2} parent=19 // pred_check_branch
        %168 = sbr.rel (%p166) target = $region28
      $region27: #{seq2seq_forward.2} parent=19 // pred_region
        %p169 = scmp.lt.s32.totalorder %s11, 1
        %s170 = scalar_select %p169, %s11, 1
        %s171 = scalar_lea.vmem %s2, %s170
      $region28: #{seq2seq_forward.2} parent=19 // pred_fallthru
        _
    $region20: #{seq2seq_forward.2} parent=5 // pred_fallthru
      _
    %p172 = scmp.le.s32.totalorder 1, %s11
    %p173 = scmp.lt.s32.totalorder %s11, 3
    %p174 = pnand %p172, %p173
    %p175 = pneg %p174
    // Predicated region
    $region29: #{seq2seq_forward.2} parent=5 // pred_check
      _
    $region30: #{seq2seq_forward.2} parent=5 // pred_check_branch
      %177 = sbr.rel (%p174) target = $region32
    $region31: #{seq2seq_forward.2} parent=5 // pred_region
      %s178 = ssub.s32 %s11, 1
      %p179 = pneg %p32
      %p180 = pneg %p29
      %p181 = scmp.lt.s32.totalorder %s16, 1
      %s182 = scalar_select %p181, %s16, 1
      %s183 = smul.addr %s182, 6
      %s184 = smul.addr %s183, 4
      %s185 = scalar_lea.vmem %s1, %s184
      %p186 = pneg %p58
      %p187 = pneg %p55
      %p188 = scmp.lt.s32.totalorder %s16, 1
      %s189 = scalar_select %p188, %s16, 1
      %s190 = scalar_lea.vmem %s2, %s189
      %p191 = pneg %p84
      %p192 = pneg %p81
      %p193 = pneg %p110
      %p194 = pneg %p107
      %p195 = scmp.lt.s32.totalorder %s16, 1
      %s196 = scalar_select %p195, %s16, 1
      %s197 = smul.addr %s196, 2
      %s198 = scalar_lea.vmem %s3, %s197
      %p199 = pneg %p136
      %p200 = pneg %p133
      %p201 = scmp.lt.s32.totalorder %s16, 1
      %s202 = scalar_select %p201, %s16, 1
      %s203 = smul.addr %s202, 2
      %s204 = scalar_lea.vmem %s4, %s203
      %p205 = scmp.lt.s32.totalorder %s16, 1
      %s206 = scalar_select %p205, %s16, 1
      %s207 = smul.addr %s206, 6
      %s208 = smul.addr %s207, 4
      %s209 = scalar_lea.vmem %s1, %s208
      %p210 = scmp.lt.s32.totalorder %s16, 1
      %s211 = scalar_select %p210, %s16, 1
      %s212 = scalar_lea.vmem %s2, %s211
      %p213 = scmp.lt.s32.totalorder %s16, 1
      %s214 = scalar_select %p213, %s16, 1
      %s215 = smul.addr %s214, 2
      %s216 = scalar_lea.vmem %s3, %s215
      %p217 = scmp.lt.s32.totalorder %s16, 1
      %s218 = scalar_select %p217, %s16, 1
      %s219 = smul.addr %s218, 2
      %s220 = scalar_lea.vmem %s4, %s219
      %v222 = vld [vmem:[%s209] sm:$0xf]
      %v223 = vld [vmem:[%s209 + $0x4] sm:$0xf]
      %v224 = vld [vmem:[%s209 + $0x8] sm:$0xf]
      %v225 = vld [vmem:[%s209 + $0xc] sm:$0xf]
      %v226 = vld [vmem:[%s209 + $0x10] sm:$0xf]
      %v227 = vld [vmem:[%s209 + $0x14] sm:$0xf]
      %v228 = vld [vmem:[%s212] sm:$0x1]
      %s229 = smul.u32 %s16, 7
      %s230 = scalar_lea.vmem %s0, %s229
      %v231 = vld [vmem:[%s230] sm:$0x1]
      %v236 = vunpack.c.l.b16 %v224
      %v237 = vunpack.c.l.b16 %v225
      %v238 = vunpack.c.l.b16 %v226
      %v239 = vunpack.c.l.b16 %v227
      %v240 = vpack.c.b16 %v237, %v236
      %v241 = vpack.c.b16 %v239, %v238
      %vm244 = vcmask 261120
      %v246 = vsel %vm244, 0, 0
      %248 = vmatprep.subr.bf16.mxu0 0
      %249 = vmatpush1.bf16.msra.mxu0 %v240
      %250 = vmatprep.subr.bf16.mxu0 0
      %251 = vmatpush1.bf16.msra.mxu0 %v241
      %252 = vmatprep.subr.bf16.mxu0 0
      %253 = vmatpush1.bf16.msra.mxu0 0
      %254 = vmatprep.subr.bf16.mxu0 0
      %255 = vmatpush1.bf16.msra.mxu0 0
      %256 = vmatprep.subr.bf16.mxu0 0
      %257 = vmatpush1.bf16.msra.mxu0 0
      %258 = vmatprep.subr.bf16.mxu0 0
      %259 = vmatpush1.bf16.msra.mxu0 0
      %260 = vmatprep.subr.bf16.mxu0 0
      %261 = vmatpush1.bf16.msra.mxu0 0
      %262 = vmatprep.subr.bf16.mxu0 0
      %263 = vmatpush1.bf16.msra.mxu0 0
      %264 = vmatprep.subr.bf16.mxu0 0
      %265 = vmatpush1.bf16.msra.mxu0 0
      %266 = vmatprep.subr.bf16.mxu0 0
      %267 = vmatpush1.bf16.msra.mxu0 0
      %268 = vmatprep.subr.bf16.mxu0 0
      %269 = vmatpush1.bf16.msra.mxu0 0
      %270 = vmatprep.subr.bf16.mxu0 0
      %271 = vmatpush1.bf16.msra.mxu0 0
      %272 = vmatprep.subr.bf16.mxu0 0
      %273 = vmatpush1.bf16.msra.mxu0 0
      %274 = vmatprep.subr.bf16.mxu0 0
      %275 = vmatpush1.bf16.msra.mxu0 0
      %276 = vmatprep.subr.bf16.mxu0 0
      %277 = vmatpush1.bf16.msra.mxu0 0
      %278 = vmatprep.subr.bf16.mxu0 0
      %279 = vmatpush1.bf16.msra.mxu0 0
      %280 = vmatprep.mubr.bf16.mxu0 0
      %281 = vmatmul.mubr.bf16.gmra.mrb[0].mxu0 %v246
      %v282 = vpop.f32.mrb[0].mxu0
      %v283 = vadd.f32 0.0, %v282
      %v284 = vpop.f32.mrb[0].mxu0
      %v285 = vpop.f32.mrb[0].mxu0
      %v286 = vpop.f32.mrb[0].mxu0
      %287 = vdwg.mxu0
      %v290 = vunpack.c.l.b16 %v222
      %v291 = vunpack.c.l.b16 %v223
      %v292 = vpack.c.b16 %v291, %v290
      %vm294 = vcmask 130048
      %v296 = vsel %vm294, %v231, 0
      %298 = vmatprep.subr.bf16.mxu0 0
      %299 = vmatpush1.bf16.msra.mxu0 %v292
      %300 = vmatprep.subr.bf16.mxu0 0
      %301 = vmatpush1.bf16.msra.mxu0 0
      %302 = vmatprep.subr.bf16.mxu0 0
      %303 = vmatpush1.bf16.msra.mxu0 0
      %304 = vmatprep.subr.bf16.mxu0 0
      %305 = vmatpush1.bf16.msra.mxu0 0
      %306 = vmatprep.subr.bf16.mxu0 0
      %307 = vmatpush1.bf16.msra.mxu0 0
      %308 = vmatprep.subr.bf16.mxu0 0
      %309 = vmatpush1.bf16.msra.mxu0 0
      %310 = vmatprep.subr.bf16.mxu0 0
      %311 = vmatpush1.bf16.msra.mxu0 0
      %312 = vmatprep.subr.bf16.mxu0 0
      %313 = vmatpush1.bf16.msra.mxu0 0
      %314 = vmatprep.subr.bf16.mxu0 0
      %315 = vmatpush1.bf16.msra.mxu0 0
      %316 = vmatprep.subr.bf16.mxu0 0
      %317 = vmatpush1.bf16.msra.mxu0 0
      %318 = vmatprep.subr.bf16.mxu0 0
      %319 = vmatpush1.bf16.msra.mxu0 0
      %320 = vmatprep.subr.bf16.mxu0 0
      %321 = vmatpush1.bf16.msra.mxu0 0
      %322 = vmatprep.subr.bf16.mxu0 0
      %323 = vmatpush1.bf16.msra.mxu0 0
      %324 = vmatprep.subr.bf16.mxu0 0
      %325 = vmatpush1.bf16.msra.mxu0 0
      %326 = vmatprep.subr.bf16.mxu0 0
      %327 = vmatpush1.bf16.msra.mxu0 0
      %328 = vmatprep.subr.bf16.mxu0 0
      %329 = vmatpush1.bf16.msra.mxu0 0
      %330 = vmatprep.mubr.bf16.mxu0 0
      %331 = vmatmul.mubr.bf16.gmra.mrb[0].mxu0 %v296
      %v332 = vpop.f32.mrb[0].mxu0
      %v333 = vadd.f32 %v283, %v332
      %v334 = vpop.f32.mrb[0].mxu0
      %v335 = vpop.f32.mrb[0].mxu0
      %v336 = vpop.f32.mrb[0].mxu0
      %337 = vdwg.mxu0
      %v339 = vlaneseq
      %v340 = vshrl.u32 %v339, 7
      %v341 = vsub.s32 0, %v340
      %v342 = vrot.slane %v228, %v341
      %v344 = vadd.f32 %v333, %v342
      %v345 = vxor.u32 %v344, 2147483648
      %v346 = vmul.f32 %v345, 1.442695
      %v347 = vpow.pop %v346
      %v348 = vadd.f32 %v347, 1.0
      %v349 = vrcp.pop %v348
      %v350 = vmul.f32 1.0, %v349
      %v351 = vtanh.pop %v344
      %v352 = vmul.f32 %v350, 0.0
      %354 = vrot.lane.b32.xlu0 %v351, 64
      %v355 = vpop.permute.xlu0 %354
      %v357 = vmul.f32 %v350, %v355
      %359 = vrot.lane.b32.xlu0 %v357, 32
      %v360 = vpop.permute.xlu0 %359
      %v362 = vadd.f32 %v352, %v360
      %v363 = vtanh.pop %v362
      %365 = vrot.lane.b32.xlu0 %v363, 64
      %v366 = vpop.permute.xlu0 %365
      %v368 = vmul.f32 %v350, %v366
      %s369 = smul.u32 %s16, 5
      %s370 = sadd.s32 %s369, 1
      %s371 = scalar_lea.vmem %s0, %s370
      %v372 = vld [vmem:[%s371] sm:$0x1]
      %v373 = vpack.c.bf16 %v368, %v368
      %375 = vrot.lane.b32.xlu0 %v373, 32
      %v376 = vpop.permute.xlu0 %375
      %v378 = vsel %vm244, %v376, 0
      %380 = vmatprep.subr.bf16.mxu0 0
      %381 = vmatpush1.bf16.msra.mxu0 %v240
      %382 = vmatprep.subr.bf16.mxu0 0
      %383 = vmatpush1.bf16.msra.mxu0 %v241
      %384 = vmatprep.subr.bf16.mxu0 0
      %385 = vmatpush1.bf16.msra.mxu0 0
      %386 = vmatprep.subr.bf16.mxu0 0
      %387 = vmatpush1.bf16.msra.mxu0 0
      %388 = vmatprep.subr.bf16.mxu0 0
      %389 = vmatpush1.bf16.msra.mxu0 0
      %390 = vmatprep.subr.bf16.mxu0 0
      %391 = vmatpush1.bf16.msra.mxu0 0
      %392 = vmatprep.subr.bf16.mxu0 0
      %393 = vmatpush1.bf16.msra.mxu0 0
      %394 = vmatprep.subr.bf16.mxu0 0
      %395 = vmatpush1.bf16.msra.mxu0 0
      %396 = vmatprep.subr.bf16.mxu0 0
      %397 = vmatpush1.bf16.msra.mxu0 0
      %398 = vmatprep.subr.bf16.mxu0 0
      %399 = vmatpush1.bf16.msra.mxu0 0
      %400 = vmatprep.subr.bf16.mxu0 0
      %401 = vmatpush1.bf16.msra.mxu0 0
      %402 = vmatprep.subr.bf16.mxu0 0
      %403 = vmatpush1.bf16.msra.mxu0 0
      %404 = vmatprep.subr.bf16.mxu0 0
      %405 = vmatpush1.bf16.msra.mxu0 0
      %406 = vmatprep.subr.bf16.mxu0 0
      %407 = vmatpush1.bf16.msra.mxu0 0
      %408 = vmatprep.subr.bf16.mxu0 0
      %409 = vmatpush1.bf16.msra.mxu0 0
      %410 = vmatprep.subr.bf16.mxu0 0
      %411 = vmatpush1.bf16.msra.mxu0 0
      %412 = vmatprep.mubr.bf16.mxu0 0
      %413 = vmatmul.mubr.bf16.gmra.mrb[0].mxu0 %v378
      %v414 = vpop.f32.mrb[0].mxu0
      %v415 = vadd.f32 0.0, %v414
      %v416 = vpop.f32.mrb[0].mxu0
      %v417 = vpop.f32.mrb[0].mxu0
      %v418 = vpop.f32.mrb[0].mxu0
      %419 = vdwg.mxu0
      %v421 = vsel %vm294, %v372, 0
      %423 = vmatprep.subr.bf16.mxu0 0
      %424 = vmatpush1.bf16.msra.mxu0 %v292
      %425 = vmatprep.subr.bf16.mxu0 0
      %426 = vmatpush1.bf16.msra.mxu0 0
      %427 = vmatprep.subr.bf16.mxu0 0
      %428 = vmatpush1.bf16.msra.mxu0 0
      %429 = vmatprep.subr.bf16.mxu0 0
      %430 = vmatpush1.bf16.msra.mxu0 0
      %431 = vmatprep.subr.bf16.mxu0 0
      %432 = vmatpush1.bf16.msra.mxu0 0
      %433 = vmatprep.subr.bf16.mxu0 0
      %434 = vmatpush1.bf16.msra.mxu0 0
      %435 = vmatprep.subr.bf16.mxu0 0
      %436 = vmatpush1.bf16.msra.mxu0 0
      %437 = vmatprep.subr.bf16.mxu0 0
      %438 = vmatpush1.bf16.msra.mxu0 0
      %439 = vmatprep.subr.bf16.mxu0 0
      %440 = vmatpush1.bf16.msra.mxu0 0
      %441 = vmatprep.subr.bf16.mxu0 0
      %442 = vmatpush1.bf16.msra.mxu0 0
      %443 = vmatprep.subr.bf16.mxu0 0
      %444 = vmatpush1.bf16.msra.mxu0 0
      %445 = vmatprep.subr.bf16.mxu0 0
      %446 = vmatpush1.bf16.msra.mxu0 0
      %447 = vmatprep.subr.bf16.mxu0 0
      %448 = vmatpush1.bf16.msra.mxu0 0
      %449 = vmatprep.subr.bf16.mxu0 0
      %450 = vmatpush1.bf16.msra.mxu0 0
      %451 = vmatprep.subr.bf16.mxu0 0
      %452 = vmatpush1.bf16.msra.mxu0 0
      %453 = vmatprep.subr.bf16.mxu0 0
      %454 = vmatpush1.bf16.msra.mxu0 0
      %455 = vmatprep.mubr.bf16.mxu0 0
      %456 = vmatmul.mubr.bf16.gmra.mrb[0].mxu0 %v421
      %v457 = vpop.f32.mrb[0].mxu0
      %v458 = vadd.f32 %v415, %v457
      %v459 = vpop.f32.mrb[0].mxu0
      %v460 = vpop.f32.mrb[0].mxu0
      %v461 = vpop.f32.mrb[0].mxu0
      %462 = vdwg.mxu0
      %v463 = vadd.f32 %v458, %v342
      %v464 = vxor.u32 %v463, 2147483648
      %v465 = vmul.f32 %v464, 1.442695
      %v466 = vpow.pop %v465
      %v467 = vadd.f32 %v466, 1.0
      %v468 = vrcp.pop %v467
      %v469 = vmul.f32 1.0, %v468
      %v470 = vtanh.pop %v463
      %v471 = vmul.f32 %v469, %v362
      %473 = vrot.lane.b32.xlu0 %v470, 64
      %v474 = vpop.permute.xlu0 %473
      %v476 = vmul.f32 %v469, %v474
      %478 = vrot.lane.b32.xlu0 %v476, 32
      %v479 = vpop.permute.xlu0 %478
      %v481 = vadd.f32 %v471, %v479
      %v482 = vtanh.pop %v481
      %484 = vrot.lane.b32.xlu0 %v482, 64
      %v485 = vpop.permute.xlu0 %484
      %v487 = vmul.f32 %v469, %v485
      %s488 = smul.u32 %s16, 3
      %s489 = sadd.s32 %s488, 2
      %s490 = scalar_lea.vmem %s0, %s489
      %v491 = vld [vmem:[%s490] sm:$0x1]
      %v492 = vpack.c.bf16 %v487, %v487
      %494 = vrot.lane.b32.xlu0 %v492, 32
      %v495 = vpop.permute.xlu0 %494
      %v497 = vsel %vm244, %v495, 0
      %499 = vmatprep.subr.bf16.mxu0 0
      %500 = vmatpush1.bf16.msra.mxu0 %v240
      %501 = vmatprep.subr.bf16.mxu0 0
      %502 = vmatpush1.bf16.msra.mxu0 %v241
      %503 = vmatprep.subr.bf16.mxu0 0
      %504 = vmatpush1.bf16.msra.mxu0 0
      %505 = vmatprep.subr.bf16.mxu0 0
      %506 = vmatpush1.bf16.msra.mxu0 0
      %507 = vmatprep.subr.bf16.mxu0 0
      %508 = vmatpush1.bf16.msra.mxu0 0
      %509 = vmatprep.subr.bf16.mxu0 0
      %510 = vmatpush1.bf16.msra.mxu0 0
      %511 = vmatprep.subr.bf16.mxu0 0
      %512 = vmatpush1.bf16.msra.mxu0 0
      %513 = vmatprep.subr.bf16.mxu0 0
      %514 = vmatpush1.bf16.msra.mxu0 0
      %515 = vmatprep.subr.bf16.mxu0 0
      %516 = vmatpush1.bf16.msra.mxu0 0
      %517 = vmatprep.subr.bf16.mxu0 0
      %518 = vmatpush1.bf16.msra.mxu0 0
      %519 = vmatprep.subr.bf16.mxu0 0
      %520 = vmatpush1.bf16.msra.mxu0 0
      %521 = vmatprep.subr.bf16.mxu0 0
      %522 = vmatpush1.bf16.msra.mxu0 0
      %523 = vmatprep.subr.bf16.mxu0 0
      %524 = vmatpush1.bf16.msra.mxu0 0
      %525 = vmatprep.subr.bf16.mxu0 0
      %526 = vmatpush1.bf16.msra.mxu0 0
      %527 = vmatprep.subr.bf16.mxu0 0
      %528 = vmatpush1.bf16.msra.mxu0 0
      %529 = vmatprep.subr.bf16.mxu0 0
      %530 = vmatpush1.bf16.msra.mxu0 0
      %531 = vmatprep.mubr.bf16.mxu0 0
      %532 = vmatmul.mubr.bf16.gmra.mrb[0].mxu0 %v497
      %v533 = vpop.f32.mrb[0].mxu0
      %v534 = vadd.f32 0.0, %v533
      %v535 = vpop.f32.mrb[0].mxu0
      %v536 = vpop.f32.mrb[0].mxu0
      %v537 = vpop.f32.mrb[0].mxu0
      %538 = vdwg.mxu0
      %v540 = vsel %vm294, %v491, 0
      %542 = vmatprep.subr.bf16.mxu0 0
      %543 = vmatpush1.bf16.msra.mxu0 %v292
      %544 = vmatprep.subr.bf16.mxu0 0
      %545 = vmatpush1.bf16.msra.mxu0 0
      %546 = vmatprep.subr.bf16.mxu0 0
      %547 = vmatpush1.bf16.msra.mxu0 0
      %548 = vmatprep.subr.bf16.mxu0 0
      %549 = vmatpush1.bf16.msra.mxu0 0
      %550 = vmatprep.subr.bf16.mxu0 0
      %551 = vmatpush1.bf16.msra.mxu0 0
      %552 = vmatprep.subr.bf16.mxu0 0
      %553 = vmatpush1.bf16.msra.mxu0 0
      %554 = vmatprep.subr.bf16.mxu0 0
      %555 = vmatpush1.bf16.msra.mxu0 0
      %556 = vmatprep.subr.bf16.mxu0 0
      %557 = vmatpush1.bf16.msra.mxu0 0
      %558 = vmatprep.subr.bf16.mxu0 0
      %559 = vmatpush1.bf16.msra.mxu0 0
      %560 = vmatprep.subr.bf16.mxu0 0
      %561 = vmatpush1.bf16.msra.mxu0 0
      %562 = vmatprep.subr.bf16.mxu0 0
      %563 = vmatpush1.bf16.msra.mxu0 0
      %564 = vmatprep.subr.bf16.mxu0 0
      %565 = vmatpush1.bf16.msra.mxu0 0
      %566 = vmatprep.subr.bf16.mxu0 0
      %567 = vmatpush1.bf16.msra.mxu0 0
      %568 = vmatprep.subr.bf16.mxu0 0
      %569 = vmatpush1.bf16.msra.mxu0 0
      %570 = vmatprep.subr.bf16.mxu0 0
      %571 = vmatpush1.bf16.msra.mxu0 0
      %572 = vmatprep.subr.bf16.mxu0 0
      %573 = vmatpush1.bf16.msra.mxu0 0
      %574 = vmatprep.mubr.bf16.mxu0 0
      %575 = vmatmul.mubr.bf16.gmra.mrb[0].mxu0 %v540
      %v576 = vpop.f32.mrb[0].mxu0
      %v577 = vadd.f32 %v534, %v576
      %v578 = vpop.f32.mrb[0].mxu0
      %v579 = vpop.f32.mrb[0].mxu0
      %v580 = vpop.f32.mrb[0].mxu0
      %581 = vdwg.mxu0
      %v582 = vadd.f32 %v577, %v342
      %v583 = vxor.u32 %v582, 2147483648
      %v584 = vmul.f32 %v583, 1.442695
      %v585 = vpow.pop %v584
      %v586 = vadd.f32 %v585, 1.0
      %v587 = vrcp.pop %v586
      %v588 = vmul.f32 1.0, %v587
      %v589 = vtanh.pop %v582
      %v590 = vmul.f32 %v588, %v481
      %592 = vrot.lane.b32.xlu0 %v589, 64
      %v593 = vpop.permute.xlu0 %592
      %v595 = vmul.f32 %v588, %v593
      %597 = vrot.lane.b32.xlu0 %v595, 32
      %v598 = vpop.permute.xlu0 %597
      %v600 = vadd.f32 %v590, %v598
      %v601 = vtanh.pop %v600
      %603 = vrot.lane.b32.xlu0 %v601, 64
      %v604 = vpop.permute.xlu0 %603
      %v606 = vmul.f32 %v588, %v604
      %s607 = sadd.s32 %s16, 3
      %s608 = scalar_lea.vmem %s0, %s607
      %v609 = vld [vmem:[%s608] sm:$0x1]
      %v610 = vpack.c.bf16 %v606, %v606
      %612 = vrot.lane.b32.xlu0 %v610, 32
      %v613 = vpop.permute.xlu0 %612
      %v615 = vsel %vm244, %v613, 0
      %617 = vmatprep.subr.bf16.mxu0 0
      %618 = vmatpush1.bf16.msra.mxu0 %v240
      %619 = vmatprep.subr.bf16.mxu0 0
      %620 = vmatpush1.bf16.msra.mxu0 %v241
      %621 = vmatprep.subr.bf16.mxu0 0
      %622 = vmatpush1.bf16.msra.mxu0 0
      %623 = vmatprep.subr.bf16.mxu0 0
      %624 = vmatpush1.bf16.msra.mxu0 0
      %625 = vmatprep.subr.bf16.mxu0 0
      %626 = vmatpush1.bf16.msra.mxu0 0
      %627 = vmatprep.subr.bf16.mxu0 0
      %628 = vmatpush1.bf16.msra.mxu0 0
      %629 = vmatprep.subr.bf16.mxu0 0
      %630 = vmatpush1.bf16.msra.mxu0 0
      %631 = vmatprep.subr.bf16.mxu0 0
      %632 = vmatpush1.bf16.msra.mxu0 0
      %633 = vmatprep.subr.bf16.mxu0 0
      %634 = vmatpush1.bf16.msra.mxu0 0
      %635 = vmatprep.subr.bf16.mxu0 0
      %636 = vmatpush1.bf16.msra.mxu0 0
      %637 = vmatprep.subr.bf16.mxu0 0
      %638 = vmatpush1.bf16.msra.mxu0 0
      %639 = vmatprep.subr.bf16.mxu0 0
      %640 = vmatpush1.bf16.msra.mxu0 0
      %641 = vmatprep.subr.bf16.mxu0 0
      %642 = vmatpush1.bf16.msra.mxu0 0
      %643 = vmatprep.subr.bf16.mxu0 0
      %644 = vmatpush1.bf16.msra.mxu0 0
      %645 = vmatprep.subr.bf16.mxu0 0
      %646 = vmatpush1.bf16.msra.mxu0 0
      %647 = vmatprep.subr.bf16.mxu0 0
      %648 = vmatpush1.bf16.msra.mxu0 0
      %649 = vmatprep.mubr.bf16.mxu0 0
      %650 = vmatmul.mubr.bf16.gmra.mrb[0].mxu0 %v615
      %v651 = vpop.f32.mrb[0].mxu0
      %v652 = vadd.f32 0.0, %v651
      %v653 = vpop.f32.mrb[0].mxu0
      %v654 = vpop.f32.mrb[0].mxu0
      %v655 = vpop.f32.mrb[0].mxu0
      %656 = vdwg.mxu0
      %v658 = vsel %vm294, %v609, 0
      %660 = vmatprep.subr.bf16.mxu0 0
      %661 = vmatpush1.bf16.msra.mxu0 %v292
      %662 = vmatprep.subr.bf16.mxu0 0
      %663 = vmatpush1.bf16.msra.mxu0 0
      %664 = vmatprep.subr.bf16.mxu0 0
      %665 = vmatpush1.bf16.msra.mxu0 0
      %666 = vmatprep.subr.bf16.mxu0 0
      %667 = vmatpush1.bf16.msra.mxu0 0
      %668 = vmatprep.subr.bf16.mxu0 0
      %669 = vmatpush1.bf16.msra.mxu0 0
      %670 = vmatprep.subr.bf16.mxu0 0
      %671 = vmatpush1.bf16.msra.mxu0 0
      %672 = vmatprep.subr.bf16.mxu0 0
      %673 = vmatpush1.bf16.msra.mxu0 0
      %674 = vmatprep.subr.bf16.mxu0 0
      %675 = vmatpush1.bf16.msra.mxu0 0
      %676 = vmatprep.subr.bf16.mxu0 0
      %677 = vmatpush1.bf16.msra.mxu0 0
      %678 = vmatprep.subr.bf16.mxu0 0
      %679 = vmatpush1.bf16.msra.mxu0 0
      %680 = vmatprep.subr.bf16.mxu0 0
      %681 = vmatpush1.bf16.msra.mxu0 0
      %682 = vmatprep.subr.bf16.mxu0 0
      %683 = vmatpush1.bf16.msra.mxu0 0
      %684 = vmatprep.subr.bf16.mxu0 0
      %685 = vmatpush1.bf16.msra.mxu0 0
      %686 = vmatprep.subr.bf16.mxu0 0
      %687 = vmatpush1.bf16.msra.mxu0 0
      %688 = vmatprep.subr.bf16.mxu0 0
      %689 = vmatpush1.bf16.msra.mxu0 0
      %690 = vmatprep.subr.bf16.mxu0 0
      %691 = vmatpush1.bf16.msra.mxu0 0
      %692 = vmatprep.mubr.bf16.mxu0 0
      %693 = vmatmul.mubr.bf16.gmra.mrb[0].mxu0 %v658
      %v694 = vpop.f32.mrb[0].mxu0
      %v695 = vadd.f32 %v652, %v694
      %v696 = vpop.f32.mrb[0].mxu0
      %v697 = vpop.f32.mrb[0].mxu0
      %v698 = vpop.f32.mrb[0].mxu0
      %699 = vdwg.mxu0
      %v700 = vadd.f32 %v695, %v342
      %v701 = vxor.u32 %v700, 2147483648
      %v702 = vmul.f32 %v701, 1.442695
      %v703 = vpow.pop %v702
      %v704 = vadd.f32 %v703, 1.0
      %v705 = vrcp.pop %v704
      %v706 = vmul.f32 1.0, %v705
      %v707 = vtanh.pop %v700
      %v708 = vmul.f32 %v706, %v600
      %710 = vrot.lane.b32.xlu0 %v707, 64
      %v711 = vpop.permute.xlu0 %710
      %v713 = vmul.f32 %v706, %v711
      %715 = vrot.lane.b32.xlu0 %v713, 32
      %v716 = vpop.permute.xlu0 %715
      %v718 = vadd.f32 %v708, %v716
      %v719 = vtanh.pop %v718
      %721 = vrot.lane.b32.xlu0 %v719, 64
      %v722 = vpop.permute.xlu0 %721
      %v724 = vmul.f32 %v706, %v722
      %s725 = ssub.s32 4, %s16
      %s726 = scalar_lea.vmem %s0, %s725
      %v727 = vld [vmem:[%s726] sm:$0x1]
      %v728 = vpack.c.bf16 %v724, %v724
      %730 = vrot.lane.b32.xlu0 %v728, 32
      %v731 = vpop.permute.xlu0 %730
      %v733 = vsel %vm244, %v731, 0
      %735 = vmatprep.subr.bf16.mxu0 0
      %736 = vmatpush1.bf16.msra.mxu0 %v240
      %737 = vmatprep.subr.bf16.mxu0 0
      %738 = vmatpush1.bf16.msra.mxu0 %v241
      %739 = vmatprep.subr.bf16.mxu0 0
      %740 = vmatpush1.bf16.msra.mxu0 0
      %741 = vmatprep.subr.bf16.mxu0 0
      %742 = vmatpush1.bf16.msra.mxu0 0
      %743 = vmatprep.subr.bf16.mxu0 0
      %744 = vmatpush1.bf16.msra.mxu0 0
      %745 = vmatprep.subr.bf16.mxu0 0
      %746 = vmatpush1.bf16.msra.mxu0 0
      %747 = vmatprep.subr.bf16.mxu0 0
      %748 = vmatpush1.bf16.msra.mxu0 0
      %749 = vmatprep.subr.bf16.mxu0 0
      %750 = vmatpush1.bf16.msra.mxu0 0
      %751 = vmatprep.subr.bf16.mxu0 0
      %752 = vmatpush1.bf16.msra.mxu0 0
      %753 = vmatprep.subr.bf16.mxu0 0
      %754 = vmatpush1.bf16.msra.mxu0 0
      %755 = vmatprep.subr.bf16.mxu0 0
      %756 = vmatpush1.bf16.msra.mxu0 0
      %757 = vmatprep.subr.bf16.mxu0 0
      %758 = vmatpush1.bf16.msra.mxu0 0
      %759 = vmatprep.subr.bf16.mxu0 0
      %760 = vmatpush1.bf16.msra.mxu0 0
      %761 = vmatprep.subr.bf16.mxu0 0
      %762 = vmatpush1.bf16.msra.mxu0 0
      %763 = vmatprep.subr.bf16.mxu0 0
      %764 = vmatpush1.bf16.msra.mxu0 0
      %765 = vmatprep.subr.bf16.mxu0 0
      %766 = vmatpush1.bf16.msra.mxu0 0
      %767 = vmatprep.mubr.bf16.mxu0 0
      %768 = vmatmul.mubr.bf16.gmra.mrb[0].mxu0 %v733
      %v769 = vpop.f32.mrb[0].mxu0
      %v770 = vadd.f32 0.0, %v769
      %v771 = vpop.f32.mrb[0].mxu0
      %v772 = vpop.f32.mrb[0].mxu0
      %v773 = vpop.f32.mrb[0].mxu0
      %774 = vdwg.mxu0
      %v776 = vsel %vm294, %v727, 0
      %778 = vmatprep.subr.bf16.mxu0 0
      %779 = vmatpush1.bf16.msra.mxu0 %v292
      %780 = vmatprep.subr.bf16.mxu0 0
      %781 = vmatpush1.bf16.msra.mxu0 0
      %782 = vmatprep.subr.bf16.mxu0 0
      %783 = vmatpush1.bf16.msra.mxu0 0
      %784 = vmatprep.subr.bf16.mxu0 0
      %785 = vmatpush1.bf16.msra.mxu0 0
      %786 = vmatprep.subr.bf16.mxu0 0
      %787 = vmatpush1.bf16.msra.mxu0 0
      %788 = vmatprep.subr.bf16.mxu0 0
      %789 = vmatpush1.bf16.msra.mxu0 0
      %790 = vmatprep.subr.bf16.mxu0 0
      %791 = vmatpush1.bf16.msra.mxu0 0
      %792 = vmatprep.subr.bf16.mxu0 0
      %793 = vmatpush1.bf16.msra.mxu0 0
      %794 = vmatprep.subr.bf16.mxu0 0
      %795 = vmatpush1.bf16.msra.mxu0 0
      %796 = vmatprep.subr.bf16.mxu0 0
      %797 = vmatpush1.bf16.msra.mxu0 0
      %798 = vmatprep.subr.bf16.mxu0 0
      %799 = vmatpush1.bf16.msra.mxu0 0
      %800 = vmatprep.subr.bf16.mxu0 0
      %801 = vmatpush1.bf16.msra.mxu0 0
      %802 = vmatprep.subr.bf16.mxu0 0
      %803 = vmatpush1.bf16.msra.mxu0 0
      %804 = vmatprep.subr.bf16.mxu0 0
      %805 = vmatpush1.bf16.msra.mxu0 0
      %806 = vmatprep.subr.bf16.mxu0 0
      %807 = vmatpush1.bf16.msra.mxu0 0
      %808 = vmatprep.subr.bf16.mxu0 0
      %809 = vmatpush1.bf16.msra.mxu0 0
      %810 = vmatprep.mubr.bf16.mxu0 0
      %811 = vmatmul.mubr.bf16.gmra.mrb[0].mxu0 %v776
      %v812 = vpop.f32.mrb[0].mxu0
      %v813 = vadd.f32 %v770, %v812
      %v814 = vpop.f32.mrb[0].mxu0
      %v815 = vpop.f32.mrb[0].mxu0
      %v816 = vpop.f32.mrb[0].mxu0
      %817 = vdwg.mxu0
      %v818 = vadd.f32 %v813, %v342
      %v819 = vxor.u32 %v818, 2147483648
      %v820 = vmul.f32 %v819, 1.442695
      %v821 = vpow.pop %v820
      %v822 = vadd.f32 %v821, 1.0
      %v823 = vrcp.pop %v822
      %v824 = vmul.f32 1.0, %v823
      %v825 = vtanh.pop %v818
      %v826 = vmul.f32 %v824, %v718
      %828 = vrot.lane.b32.xlu0 %v825, 64
      %v829 = vpop.permute.xlu0 %828
      %v831 = vmul.f32 %v824, %v829
      %833 = vrot.lane.b32.xlu0 %v831, 32
      %v834 = vpop.permute.xlu0 %833
      %v836 = vadd.f32 %v826, %v834
      %v837 = vtanh.pop %v836
      %839 = vrot.lane.b32.xlu0 %v837, 64
      %v840 = vpop.permute.xlu0 %839
      %v842 = vmul.f32 %v824, %v840
      %s843 = smul.u32 %s16, 4294967293
      %s844 = sadd.s32 %s843, 5
      %s845 = scalar_lea.vmem %s0, %s844
      %v846 = vld [vmem:[%s845] sm:$0x1]
      %v847 = vpack.c.bf16 %v842, %v842
      %849 = vrot.lane.b32.xlu0 %v847, 32
      %v850 = vpop.permute.xlu0 %849
      %v852 = vsel %vm244, %v850, 0
      %854 = vmatprep.subr.bf16.mxu0 0
      %855 = vmatpush1.bf16.msra.mxu0 %v240
      %856 = vmatprep.subr.bf16.mxu0 0
      %857 = vmatpush1.bf16.msra.mxu0 %v241
      %858 = vmatprep.subr.bf16.mxu0 0
      %859 = vmatpush1.bf16.msra.mxu0 0
      %860 = vmatprep.subr.bf16.mxu0 0
      %861 = vmatpush1.bf16.msra.mxu0 0
      %862 = vmatprep.subr.bf16.mxu0 0
      %863 = vmatpush1.bf16.msra.mxu0 0
      %864 = vmatprep.subr.bf16.mxu0 0
      %865 = vmatpush1.bf16.msra.mxu0 0
      %866 = vmatprep.subr.bf16.mxu0 0
      %867 = vmatpush1.bf16.msra.mxu0 0
      %868 = vmatprep.subr.bf16.mxu0 0
      %869 = vmatpush1.bf16.msra.mxu0 0
      %870 = vmatprep.subr.bf16.mxu0 0
      %871 = vmatpush1.bf16.msra.mxu0 0
      %872 = vmatprep.subr.bf16.mxu0 0
      %873 = vmatpush1.bf16.msra.mxu0 0
      %874 = vmatprep.subr.bf16.mxu0 0
      %875 = vmatpush1.bf16.msra.mxu0 0
      %876 = vmatprep.subr.bf16.mxu0 0
      %877 = vmatpush1.bf16.msra.mxu0 0
      %878 = vmatprep.subr.bf16.mxu0 0
      %879 = vmatpush1.bf16.msra.mxu0 0
      %880 = vmatprep.subr.bf16.mxu0 0
      %881 = vmatpush1.bf16.msra.mxu0 0
      %882 = vmatprep.subr.bf16.mxu0 0
      %883 = vmatpush1.bf16.msra.mxu0 0
      %884 = vmatprep.subr.bf16.mxu0 0
      %885 = vmatpush1.bf16.msra.mxu0 0
      %886 = vmatprep.mubr.bf16.mxu0 0
      %887 = vmatmul.mubr.bf16.gmra.mrb[0].mxu0 %v852
      %v888 = vpop.f32.mrb[0].mxu0
      %v889 = vadd.f32 0.0, %v888
      %v890 = vpop.f32.mrb[0].mxu0
      %v891 = vpop.f32.mrb[0].mxu0
      %v892 = vpop.f32.mrb[0].mxu0
      %893 = vdwg.mxu0
      %v895 = vsel %vm294, %v846, 0
      %897 = vmatprep.subr.bf16.mxu0 0
      %898 = vmatpush1.bf16.msra.mxu0 %v292
      %899 = vmatprep.subr.bf16.mxu0 0
      %900 = vmatpush1.bf16.msra.mxu0 0
      %901 = vmatprep.subr.bf16.mxu0 0
      %902 = vmatpush1.bf16.msra.mxu0 0
      %903 = vmatprep.subr.bf16.mxu0 0
      %904 = vmatpush1.bf16.msra.mxu0 0
      %905 = vmatprep.subr.bf16.mxu0 0
      %906 = vmatpush1.bf16.msra.mxu0 0
      %907 = vmatprep.subr.bf16.mxu0 0
      %908 = vmatpush1.bf16.msra.mxu0 0
      %909 = vmatprep.subr.bf16.mxu0 0
      %910 = vmatpush1.bf16.msra.mxu0 0
      %911 = vmatprep.subr.bf16.mxu0 0
      %912 = vmatpush1.bf16.msra.mxu0 0
      %913 = vmatprep.subr.bf16.mxu0 0
      %914 = vmatpush1.bf16.msra.mxu0 0
      %915 = vmatprep.subr.bf16.mxu0 0
      %916 = vmatpush1.bf16.msra.mxu0 0
      %917 = vmatprep.subr.bf16.mxu0 0
      %918 = vmatpush1.bf16.msra.mxu0 0
      %919 = vmatprep.subr.bf16.mxu0 0
      %920 = vmatpush1.bf16.msra.mxu0 0
      %921 = vmatprep.subr.bf16.mxu0 0
      %922 = vmatpush1.bf16.msra.mxu0 0
      %923 = vmatprep.subr.bf16.mxu0 0
      %924 = vmatpush1.bf16.msra.mxu0 0
      %925 = vmatprep.subr.bf16.mxu0 0
      %926 = vmatpush1.bf16.msra.mxu0 0
      %927 = vmatprep.subr.bf16.mxu0 0
      %928 = vmatpush1.bf16.msra.mxu0 0
      %929 = vmatprep.mubr.bf16.mxu0 0
      %930 = vmatmul.mubr.bf16.gmra.mrb[0].mxu0 %v895
      %v931 = vpop.f32.mrb[0].mxu0
      %v932 = vadd.f32 %v889, %v931
      %v933 = vpop.f32.mrb[0].mxu0
      %v934 = vpop.f32.mrb[0].mxu0
      %v935 = vpop.f32.mrb[0].mxu0
      %936 = vdwg.mxu0
      %v937 = vadd.f32 %v932, %v342
      %v938 = vxor.u32 %v937, 2147483648
      %v939 = vmul.f32 %v938, 1.442695
      %v940 = vpow.pop %v939
      %v941 = vadd.f32 %v940, 1.0
      %v942 = vrcp.pop %v941
      %v943 = vmul.f32 1.0, %v942
      %v944 = vtanh.pop %v937
      %v945 = vmul.f32 %v943, %v836
      %947 = vrot.lane.b32.xlu0 %v944, 64
      %v948 = vpop.permute.xlu0 %947
      %v950 = vmul.f32 %v943, %v948
      %952 = vrot.lane.b32.xlu0 %v950, 32
      %v953 = vpop.permute.xlu0 %952
      %v955 = vadd.f32 %v945, %v953
      %v956 = vtanh.pop %v955
      %958 = vrot.lane.b32.xlu0 %v956, 64
      %v959 = vpop.permute.xlu0 %958
      %v961 = vmul.f32 %v943, %v959
      %s962 = smul.u32 %s16, 4294967291
      %s963 = sadd.s32 %s962, 6
      %s964 = scalar_lea.vmem %s0, %s963
      %v965 = vld [vmem:[%s964] sm:$0x1]
      %v966 = vpack.c.bf16 %v961, %v961
      %968 = vrot.lane.b32.xlu0 %v966, 32
      %v969 = vpop.permute.xlu0 %968
      %v971 = vsel %vm244, %v969, 0
      %973 = vmatprep.subr.bf16.mxu0 0
      %974 = vmatpush1.bf16.msra.mxu0 %v240
      %975 = vmatprep.subr.bf16.mxu0 0
      %976 = vmatpush1.bf16.msra.mxu0 %v241
      %977 = vmatprep.subr.bf16.mxu0 0
      %978 = vmatpush1.bf16.msra.mxu0 0
      %979 = vmatprep.subr.bf16.mxu0 0
      %980 = vmatpush1.bf16.msra.mxu0 0
      %981 = vmatprep.subr.bf16.mxu0 0
      %982 = vmatpush1.bf16.msra.mxu0 0
      %983 = vmatprep.subr.bf16.mxu0 0
      %984 = vmatpush1.bf16.msra.mxu0 0
      %985 = vmatprep.subr.bf16.mxu0 0
      %986 = vmatpush1.bf16.msra.mxu0 0
      %987 = vmatprep.subr.bf16.mxu0 0
      %988 = vmatpush1.bf16.msra.mxu0 0
      %989 = vmatprep.subr.bf16.mxu0 0
      %990 = vmatpush1.bf16.msra.mxu0 0
      %991 = vmatprep.subr.bf16.mxu0 0
      %992 = vmatpush1.bf16.msra.mxu0 0
      %993 = vmatprep.subr.bf16.mxu0 0
      %994 = vmatpush1.bf16.msra.mxu0 0
      %995 = vmatprep.subr.bf16.mxu0 0
      %996 = vmatpush1.bf16.msra.mxu0 0
      %997 = vmatprep.subr.bf16.mxu0 0
      %998 = vmatpush1.bf16.msra.mxu0 0
      %999 = vmatprep.subr.bf16.mxu0 0
      %1000 = vmatpush1.bf16.msra.mxu0 0
      %1001 = vmatprep.subr.bf16.mxu0 0
      %1002 = vmatpush1.bf16.msra.mxu0 0
      %1003 = vmatprep.subr.bf16.mxu0 0
      %1004 = vmatpush1.bf16.msra.mxu0 0
      %1005 = vmatprep.mubr.bf16.mxu0 0
      %1006 = vmatmul.mubr.bf16.gmra.mrb[0].mxu0 %v971
      %v1007 = vpop.f32.mrb[0].mxu0
      %v1008 = vadd.f32 0.0, %v1007
      %v1009 = vpop.f32.mrb[0].mxu0
      %v1010 = vpop.f32.mrb[0].mxu0
      %v1011 = vpop.f32.mrb[0].mxu0
      %1012 = vdwg.mxu0
      %v1014 = vsel %vm294, %v965, 0
      %1016 = vmatprep.subr.bf16.mxu0 0
      %1017 = vmatpush1.bf16.msra.mxu0 %v292
      %1018 = vmatprep.subr.bf16.mxu0 0
      %1019 = vmatpush1.bf16.msra.mxu0 0
      %1020 = vmatprep.subr.bf16.mxu0 0
      %1021 = vmatpush1.bf16.msra.mxu0 0
      %1022 = vmatprep.subr.bf16.mxu0 0
      %1023 = vmatpush1.bf16.msra.mxu0 0
      %1024 = vmatprep.subr.bf16.mxu0 0
      %1025 = vmatpush1.bf16.msra.mxu0 0
      %1026 = vmatprep.subr.bf16.mxu0 0
      %1027 = vmatpush1.bf16.msra.mxu0 0
      %1028 = vmatprep.subr.bf16.mxu0 0
      %1029 = vmatpush1.bf16.msra.mxu0 0
      %1030 = vmatprep.subr.bf16.mxu0 0
      %1031 = vmatpush1.bf16.msra.mxu0 0
      %1032 = vmatprep.subr.bf16.mxu0 0
      %1033 = vmatpush1.bf16.msra.mxu0 0
      %1034 = vmatprep.subr.bf16.mxu0 0
      %1035 = vmatpush1.bf16.msra.mxu0 0
      %1036 = vmatprep.subr.bf16.mxu0 0
      %1037 = vmatpush1.bf16.msra.mxu0 0
      %1038 = vmatprep.subr.bf16.mxu0 0
      %1039 = vmatpush1.bf16.msra.mxu0 0
      %1040 = vmatprep.subr.bf16.mxu0 0
      %1041 = vmatpush1.bf16.msra.mxu0 0
      %1042 = vmatprep.subr.bf16.mxu0 0
      %1043 = vmatpush1.bf16.msra.mxu0 0
      %1044 = vmatprep.subr.bf16.mxu0 0
      %1045 = vmatpush1.bf16.msra.mxu0 0
      %1046 = vmatprep.subr.bf16.mxu0 0
      %1047 = vmatpush1.bf16.msra.mxu0 0
      %1048 = vmatprep.mubr.bf16.mxu0 0
      %1049 = vmatmul.mubr.bf16.gmra.mrb[0].mxu0 %v1014
      %v1050 = vpop.f32.mrb[0].mxu0
      %v1051 = vadd.f32 %v1008, %v1050
      %v1052 = vpop.f32.mrb[0].mxu0
      %v1053 = vpop.f32.mrb[0].mxu0
      %v1054 = vpop.f32.mrb[0].mxu0
      %1055 = vdwg.mxu0
      %v1056 = vadd.f32 %v1051, %v342
      %v1057 = vxor.u32 %v1056, 2147483648
      %v1058 = vmul.f32 %v1057, 1.442695
      %v1059 = vpow.pop %v1058
      %v1060 = vadd.f32 %v1059, 1.0
      %v1061 = vrcp.pop %v1060
      %v1062 = vmul.f32 1.0, %v1061
      %v1063 = vtanh.pop %v1056
      %v1064 = vmul.f32 %v1062, %v955
      %1066 = vrot.lane.b32.xlu0 %v1063, 64
      %v1067 = vpop.permute.xlu0 %1066
      %v1069 = vmul.f32 %v1062, %v1067
      %1071 = vrot.lane.b32.xlu0 %v1069, 32
      %v1072 = vpop.permute.xlu0 %1071
      %v1074 = vadd.f32 %v1064, %v1072
      %v1075 = vtanh.pop %v1074
      %1077 = vrot.lane.b32.xlu0 %v1075, 64
      %v1078 = vpop.permute.xlu0 %1077
      %v1080 = vmul.f32 %v1062, %v1078
      %s1081 = smul.u32 %s16, 4294967289
      %s1082 = sadd.s32 %s1081, 7
      %s1083 = scalar_lea.vmem %s0, %s1082
      %v1084 = vld [vmem:[%s1083] sm:$0x1]
      %v1085 = vpack.c.bf16 %v1080, %v1080
      %1087 = vrot.lane.b32.xlu0 %v1085, 32
      %v1088 = vpop.permute.xlu0 %1087
      %v1090 = vsel %vm244, %v1088, 0
      %1092 = vmatprep.subr.bf16.mxu0 0
      %1093 = vmatpush1.bf16.msra.mxu0 %v240
      %1094 = vmatprep.subr.bf16.mxu0 0
      %1095 = vmatpush1.bf16.msra.mxu0 %v241
      %1096 = vmatprep.subr.bf16.mxu0 0
      %1097 = vmatpush1.bf16.msra.mxu0 0
      %1098 = vmatprep.subr.bf16.mxu0 0
      %1099 = vmatpush1.bf16.msra.mxu0 0
      %1100 = vmatprep.subr.bf16.mxu0 0
      %1101 = vmatpush1.bf16.msra.mxu0 0
      %1102 = vmatprep.subr.bf16.mxu0 0
      %1103 = vmatpush1.bf16.msra.mxu0 0
      %1104 = vmatprep.subr.bf16.mxu0 0
      %1105 = vmatpush1.bf16.msra.mxu0 0
      %1106 = vmatprep.subr.bf16.mxu0 0
      %1107 = vmatpush1.bf16.msra.mxu0 0
      %1108 = vmatprep.subr.bf16.mxu0 0
      %1109 = vmatpush1.bf16.msra.mxu0 0
      %1110 = vmatprep.subr.bf16.mxu0 0
      %1111 = vmatpush1.bf16.msra.mxu0 0
      %1112 = vmatprep.subr.bf16.mxu0 0
      %1113 = vmatpush1.bf16.msra.mxu0 0
      %1114 = vmatprep.subr.bf16.mxu0 0
      %1115 = vmatpush1.bf16.msra.mxu0 0
      %1116 = vmatprep.subr.bf16.mxu0 0
      %1117 = vmatpush1.bf16.msra.mxu0 0
      %1118 = vmatprep.subr.bf16.mxu0 0
      %1119 = vmatpush1.bf16.msra.mxu0 0
      %1120 = vmatprep.subr.bf16.mxu0 0
      %1121 = vmatpush1.bf16.msra.mxu0 0
      %1122 = vmatprep.subr.bf16.mxu0 0
      %1123 = vmatpush1.bf16.msra.mxu0 0
      %1124 = vmatprep.mubr.bf16.mxu0 0
      %1125 = vmatmul.mubr.bf16.gmra.mrb[0].mxu0 %v1090
      %v1126 = vpop.f32.mrb[0].mxu0
      %v1127 = vadd.f32 0.0, %v1126
      %v1128 = vpop.f32.mrb[0].mxu0
      %v1129 = vpop.f32.mrb[0].mxu0
      %v1130 = vpop.f32.mrb[0].mxu0
      %1131 = vdwg.mxu0
      %v1133 = vsel %vm294, %v1084, 0
      %1135 = vmatprep.subr.bf16.mxu0 0
      %1136 = vmatpush1.bf16.msra.mxu0 %v292
      %1137 = vmatprep.subr.bf16.mxu0 0
      %1138 = vmatpush1.bf16.msra.mxu0 0
      %1139 = vmatprep.subr.bf16.mxu0 0
      %1140 = vmatpush1.bf16.msra.mxu0 0
      %1141 = vmatprep.subr.bf16.mxu0 0
      %1142 = vmatpush1.bf16.msra.mxu0 0
      %1143 = vmatprep.subr.bf16.mxu0 0
      %1144 = vmatpush1.bf16.msra.mxu0 0
      %1145 = vmatprep.subr.bf16.mxu0 0
      %1146 = vmatpush1.bf16.msra.mxu0 0
      %1147 = vmatprep.subr.bf16.mxu0 0
      %1148 = vmatpush1.bf16.msra.mxu0 0
      %1149 = vmatprep.subr.bf16.mxu0 0
      %1150 = vmatpush1.bf16.msra.mxu0 0
      %1151 = vmatprep.subr.bf16.mxu0 0
      %1152 = vmatpush1.bf16.msra.mxu0 0
      %1153 = vmatprep.subr.bf16.mxu0 0
      %1154 = vmatpush1.bf16.msra.mxu0 0
      %1155 = vmatprep.subr.bf16.mxu0 0
      %1156 = vmatpush1.bf16.msra.mxu0 0
      %1157 = vmatprep.subr.bf16.mxu0 0
      %1158 = vmatpush1.bf16.msra.mxu0 0
      %1159 = vmatprep.subr.bf16.mxu0 0
      %1160 = vmatpush1.bf16.msra.mxu0 0
      %1161 = vmatprep.subr.bf16.mxu0 0
      %1162 = vmatpush1.bf16.msra.mxu0 0
      %1163 = vmatprep.subr.bf16.mxu0 0
      %1164 = vmatpush1.bf16.msra.mxu0 0
      %1165 = vmatprep.subr.bf16.mxu0 0
      %1166 = vmatpush1.bf16.msra.mxu0 0
      %1167 = vmatprep.mubr.bf16.mxu0 0
      %1168 = vmatmul.mubr.bf16.gmra.mrb[0].mxu0 %v1133
      %v1169 = vpop.f32.mrb[0].mxu0
      %v1170 = vadd.f32 %v1127, %v1169
      %v1171 = vpop.f32.mrb[0].mxu0
      %v1172 = vpop.f32.mrb[0].mxu0
      %v1173 = vpop.f32.mrb[0].mxu0
      %1174 = vdwg.mxu0
      %v1175 = vadd.f32 %v1170, %v342
      %v1176 = vxor.u32 %v1175, 2147483648
      %v1177 = vmul.f32 %v1176, 1.442695
      %v1178 = vpow.pop %v1177
      %v1179 = vadd.f32 %v1178, 1.0
      %v1180 = vrcp.pop %v1179
      %v1181 = vmul.f32 1.0, %v1180
      %v1182 = vtanh.pop %v1175
      %v1183 = vmul.f32 %v1181, %v1074
      %1185 = vrot.lane.b32.xlu0 %v1182, 64
      %v1186 = vpop.permute.xlu0 %1185
      %v1188 = vmul.f32 %v1181, %v1186
      %1190 = vrot.lane.b32.xlu0 %v1188, 32
      %v1191 = vpop.permute.xlu0 %1190
      %v1193 = vadd.f32 %v1183, %v1191
      %v1194 = vtanh.pop %v1193
      %1196 = vrot.lane.b32.xlu0 %v1194, 64
      %v1197 = vpop.permute.xlu0 %1196
      %v1199 = vmul.f32 %v1181, %v1197
      %1201 = vrot.lane.b32.xlu0 %v1199, 32
      %v1202 = vpop.permute.xlu0 %1201
      %vm1204 = vcmask 254976
      %1205 = vst.msk [vmem:[%s216] sm:$0x3] %vm1204, %v1202
      %1207 = vrot.lane.b32.xlu0 %v1193, 96
      %v1208 = vpop.permute.xlu0 %1207
      %1210 = vst.msk [vmem:[%s220] sm:$0x3] %vm1204, %v1208
      %p1211 = scmp.lt.s32.totalorder %s16, 1
      %s1212 = scalar_select %p1211, %s16, 1
      %s1213 = smul.addr %s1212, 2
      %s1214 = scalar_lea.vmem %s3, %s1213
      %p1215 = scmp.lt.s32.totalorder %s16, 1
      %s1216 = scalar_select %p1215, %s16, 1
      %s1217 = smul.addr %s1216, 2
      %s1218 = scalar_lea.vmem %s4, %s1217
      // Predicated region
      $region33: #{seq2seq_forward.2} parent=31 // pred_check
        %p1219 = pneg %p107
      $region34: #{seq2seq_forward.2} parent=31 // pred_check_branch
        %1221 = sbr.rel (%p1219) target = $region36
      $region35: #{seq2seq_forward.2} parent=31 // pred_region
        _
      $region36: #{seq2seq_forward.2} parent=31 // pred_fallthru
        _
      // Predicated region
      $region37: #{seq2seq_forward.2} parent=31 // pred_check
        %p1222 = pneg %p133
      $region38: #{seq2seq_forward.2} parent=31 // pred_check_branch
        %1224 = sbr.rel (%p1222) target = $region40
      $region39: #{seq2seq_forward.2} parent=31 // pred_region
        _
      $region40: #{seq2seq_forward.2} parent=31 // pred_fallthru
        _
    $region32: #{seq2seq_forward.2} parent=5 // pred_fallthru
      _
    %p1225 = scmp.le.s32.totalorder 2, %s11
    // Predicated region
    $region41: #{seq2seq_forward.2} parent=5 // pred_check
      %p1226 = pneg %p1225
    $region42: #{seq2seq_forward.2} parent=5 // pred_check_branch
      %1228 = sbr.rel (%p1226) target = $region44
    $region43: #{seq2seq_forward.2} parent=5 // pred_region
      %s1229 = ssub.s32 %s11, 2
      // Predicated region
      $region45: #{seq2seq_forward.2} parent=43 // pred_check
        %p1230 = pneg %p113
      $region46: #{seq2seq_forward.2} parent=43 // pred_check_branch
        %1232 = sbr.rel (%p1230) target = $region48
      $region47: #{seq2seq_forward.2} parent=43 // pred_region
        %p1233 = scmp.lt.s32.totalorder %s17, 1
        %s1234 = scalar_select %p1233, %s17, 1
        %s1235 = smul.addr %s1234, 2
        %s1236 = scalar_lea.vmem %s3, %s1235
      $region48: #{seq2seq_forward.2} parent=43 // pred_fallthru
        _
      // Predicated region
      $region49: #{seq2seq_forward.2} parent=43 // pred_check
        %p1237 = pneg %p139
      $region50: #{seq2seq_forward.2} parent=43 // pred_check_branch
        %1239 = sbr.rel (%p1237) target = $region52
      $region51: #{seq2seq_forward.2} parent=43 // pred_region
        %p1240 = scmp.lt.s32.totalorder %s17, 1
        %s1241 = scalar_select %p1240, %s17, 1
        %s1242 = smul.addr %s1241, 2
        %s1243 = scalar_lea.vmem %s4, %s1242
      $region52: #{seq2seq_forward.2} parent=43 // pred_fallthru
        _
    $region44: #{seq2seq_forward.2} parent=5 // pred_fallthru
      _
  $region6: #{seq2seq_forward.2} parent=0 // loop_footer
    %s15 = sadd.s32 1, %s11
  $region7: #{seq2seq_forward.2} parent=0 // loop_footer_branch
    %10 = sbr.rel target = $region3
  $region8: #{seq2seq_forward.2} parent=0 // loop_exit
    _

</llo_original>
